<compile_context>
chip_gen: v6e
topology: v6e:2x2x1
jax: 0.10.0
libtpu: 0.0.40
codegen_flags: <defaults>
</compile_context>

<pallas_src>
import math
from functools import partial

import jax
import jax.numpy as jnp
from jax import lax
from jax.experimental import pallas as pl
from jax.experimental.pallas import tpu as pltpu


def _round_up(x, m):
    return (x + m - 1) // m * m


def _tpu_kind():
    try:
        return jax.devices()[0].device_kind.lower()
    except Exception:
        return ""


def _gen_config():
    kind = _tpu_kind()
    is_v5 = "v5" in kind
    is_v6 = "v6" in kind
    is_v7 = "v7" in kind
    target_rows = 1024 if is_v6 else 512          # matmul rows per grid step
    wide_mxu = is_v6 or is_v7                     # 256x256 MXU generations
    vmem_limit = (64 if (is_v5 or is_v6) else 32) * 1024 * 1024
    return target_rows, wide_mxu, vmem_limit


def _fold_bn(w, b, bn):
    """Fold eval-mode BN scale into weight columns and BN shift + conv bias into one bias."""
    gamma, beta, rm, rv = bn
    inv = gamma * lax.rsqrt(rv + 1e-5)
    w_f = jnp.transpose(w, (2, 3, 1, 0)) * inv    # (kh, kw, Cin, Cout) scaled per Cout
    bias = beta - rm * inv
    if b is not None:
        bias = bias + b * inv
    return w_f, bias


def _pick_tn(Coutp, weight_bytes, wide_mxu):
    if weight_bytes <= 4 * 1024 * 1024:
        return Coutp                              # whole weight resident, fetched once
    if wide_mxu and Coutp % 256 == 0:
        return 256                                # fill the 256-wide MXU on v6e/v7x
    return 128


# ----------------------------------------------------------------------------
# Path A kernel (Cin <= 64): taps folded into K in the wrapper -> pure GEMM
# ----------------------------------------------------------------------------
def _gemm_bias_act_kernel(x_ref, w_ref, b_ref, o_ref, *, relu):
    y = jnp.dot(x_ref[...], w_ref[...], preferred_element_type=jnp.float32)
    y = y + b_ref[...]
    if relu:
        y = jnp.maximum(y, 0.0)
    o_ref[...] = y.astype(o_ref.dtype)


def _conv_gemm(x, w_f, bias, *, relu, out_dtype, target_rows, wide_mxu, vmem_limit):
    N, H, W, Cin = x.shape
    Cout = w_f.shape[-1]
    Coutp = _round_up(Cout, 128)
    K = 9 * Cin
    Kp = _round_up(K, 128)
    Mr = N * H * W

    # Full 9-tap im2col: cheap at small Cin and avoids padding Cin itself to 128.
    xp = jnp.pad(x.astype(jnp.bfloat16), ((0, 0), (1, 1), (1, 1), (0, 0)))
    cols = [xp[:, kh:kh + H, kw:kw + W, :] for kh in range(3) for kw in range(3)]
    xs = jnp.concatenate(cols, axis=-1).reshape(Mr, K)

    wk = jnp.pad(w_f.reshape(K, Cout), ((0, Kp - K), (0, Coutp - Cout))).astype(jnp.bfloat16)
    bk = jnp.pad(bias.astype(jnp.float32), (0, Coutp - Cout)).reshape(1, Coutp)

    tn = _pick_tn(Coutp, Kp * Coutp * 2, wide_mxu)
    out_size = jnp.dtype(out_dtype).itemsize

    tm = _round_up(min(target_rows, Mr), 8)
    # Keep >=2 row tiles when the Cout axis collapsed, so both v7x TCs get work.
    if Coutp // tn == 1 and Mr >= 16 and _round_up(Mr, tm) // tm < 2:
        tm = _round_up(-(-Mr // 2), 8)

    def est(tm_):  # double-buffered VMEM footprint estimate
        return 2 * (tm_ * Kp * 2 + Kp * tn * 2 + tm_ * tn * out_size)
    while tm > 8 and est(tm) > int(0.8 * vmem_limit):
        tm = max(8, _round_up(tm // 2, 8))

    Mp = _round_up(Mr, tm)
    xs = jnp.pad(xs, ((0, Mp - Mr), (0, Kp - K)))

    out = pl.pallas_call(
        partial(_gemm_bias_act_kernel, relu=relu),
        out_shape=jax.ShapeDtypeStruct((Mp, Coutp), out_dtype),
        grid=(Mp // tm, Coutp // tn),
        in_specs=[
            pl.BlockSpec((tm, Kp), lambda i, j: (i, 0)),
            pl.BlockSpec((Kp, tn), lambda i, j: (0, j)),
            pl.BlockSpec((1, tn), lambda i, j: (0, j)),
        ],
        out_specs=pl.BlockSpec((tm, tn), lambda i, j: (i, j)),
        compiler_params=pltpu.CompilerParams(
            dimension_semantics=("parallel", "parallel"),
            vmem_limit_bytes=vmem_limit,
        ),
    )(xs, wk, bk)
    return out[:Mr, :Cout].reshape(N, H, W, Cout)


# ----------------------------------------------------------------------------
# Path B kernel (Cin > 64): direct conv, 3 kh views, kw realized on the output side
# ----------------------------------------------------------------------------
def _conv3x3_direct_kernel(x_ref, w_ref, b_ref, o_ref, *, W, relu):
    """x_ref: (3, tm, Wp2, Cinp) bf16   kh-shifted, width padded to a multiple of 8
       w_ref: (3, 3, Cinp, tn)  bf16    BN-scale-folded weights
       b_ref: (1, tn)           f32
       o_ref: (tm, W, tn)"""
    tm, Wp2, Cinp = x_ref.shape[1], x_ref.shape[2], x_ref.shape[3]
    tn = o_ref.shape[-1]
    acc = jnp.zeros((tm, W, tn), jnp.float32)
    for kh in range(3):
        a = x_ref[kh].reshape(tm * Wp2, Cinp)       # aligned: Wp2 % 8 == 0, Cinp % 128 == 0
        for kw in range(3):
            y = jnp.dot(a, w_ref[kh, kw], preferred_element_type=jnp.float32)
            acc = acc + y.reshape(tm, Wp2, tn)[:, kw:kw + W, :]   # f32 output-side shift
    y = acc + b_ref[...].reshape(1, 1, tn)
    if relu:
        y = jnp.maximum(y, 0.0)
    o_ref[...] = y.astype(o_ref.dtype)


def _conv_direct(x, w_f, bias, *, relu, out_dtype, target_rows, wide_mxu, vmem_limit):
    N, H, W, Cin = x.shape
    Cout = w_f.shape[-1]
    Cinp = _round_up(Cin, 128)
    Coutp = _round_up(Cout, 128)
    Wp2 = _round_up(W + 2, 8)                       # sublane-aligned padded width
    Mr = N * H

    xp = jnp.pad(x.astype(jnp.bfloat16), ((0, 0), (1, 1), (1, 1), (0, Cinp - Cin)))
    xp = jnp.pad(xp, ((0, 0), (0, 0), (0, Wp2 - (W + 2)), (0, 0)))
    xs = jnp.stack([xp[:, kh:kh + H].reshape(Mr, Wp2, Cinp) for kh in range(3)], axis=0)

    wk = jnp.pad(w_f, ((0, 0), (0, 0), (0, Cinp - Cin), (0, Coutp - Cout))).astype(jnp.bfloat16)
    bk = jnp.pad(bias.astype(jnp.float32), (0, Coutp - Cout)).reshape(1, Coutp)

    tn = _pick_tn(Coutp, 9 * Cinp * Coutp * 2, wide_mxu)
    out_size = jnp.dtype(out_dtype).itemsize

    tm = max(1, min(Mr, target_rows // max(W, 1)))  # image rows per tile (~target matmul rows)
    if Coutp // tn == 1 and Mr >= 2 and _round_up(Mr, tm) // tm < 2:
        tm = -(-Mr // 2)                            # keep >=2 row tiles for the 2-TC megacore

    def est(tm_):  # double-buffered VMEM footprint estimate
        return 2 * (3 * tm_ * Wp2 * Cinp * 2 + 9 * Cinp * tn * 2 + tm_ * W * tn * out_size)
    while tm > 1 and est(tm) > int(0.8 * vmem_limit):
        tm = max(1, tm // 2)

    Mrp = _round_up(Mr, tm)
    xs = jnp.pad(xs, ((0, 0), (0, Mrp - Mr), (0, 0), (0, 0)))

    out = pl.pallas_call(
        partial(_conv3x3_direct_kernel, W=W, relu=relu),
        out_shape=jax.ShapeDtypeStruct((Mrp, W, Coutp), out_dtype),
        grid=(Mrp // tm, Coutp // tn),
        in_specs=[
            pl.BlockSpec((3, tm, Wp2, Cinp), lambda i, j: (0, i, 0, 0)),
            pl.BlockSpec((3, 3, Cinp, tn), lambda i, j: (0, 0, 0, j)),
            pl.BlockSpec((1, tn), lambda i, j: (0, j)),
        ],
        out_specs=pl.BlockSpec((tm, W, tn), lambda i, j: (i, 0, j)),
        compiler_params=pltpu.CompilerParams(
            dimension_semantics=("parallel", "parallel"),
            vmem_limit_bytes=vmem_limit,
        ),
    )(xs, wk, bk)
    return out[:Mr, :, :Cout].reshape(N, H, W, Cout)


# ----------------------------------------------------------------------------
# Conv2d(3x3, pad=1) + eval-mode BatchNorm (+ ReLU) on NHWC input
# ----------------------------------------------------------------------------
def conv3x3_bn_relu(x, w, b, bn, *, relu=True, out_dtype=jnp.float32):
    w_f, bias = _fold_bn(w, b, bn)
    target_rows, wide_mxu, vmem_limit = _gen_config()
    fn = _conv_gemm if x.shape[-1] <= 64 else _conv_direct
    return fn(x, w_f, bias, relu=relu, out_dtype=out_dtype,
              target_rows=target_rows, wide_mxu=wide_mxu, vmem_limit=vmem_limit)


# ----------------------------------------------------------------------------
# DoubleConv forward (NCHW boundary, NHWC internally)
# ----------------------------------------------------------------------------
def double_conv(x_nchw, p):
    x = jnp.transpose(x_nchw, (0, 2, 3, 1)).astype(jnp.float32)
    h = conv3x3_bn_relu(x, p["w1"], p["b1"], p["bn1"],
                        relu=True, out_dtype=jnp.bfloat16)   # inter-layer act kept bf16
    y = conv3x3_bn_relu(h, p["w2"], p["b2"], p["bn2"],
                        relu=True, out_dtype=jnp.float32)
    return jnp.transpose(y, (0, 3, 1, 2))                    # NCHW


# ----------------------------------------------------------------------------
# Deterministic parameters + pure-JAX reference
# ----------------------------------------------------------------------------
def make_double_conv_params(key, in_ch, out_ch, mid_ch=None):
    if mid_ch is None:
        mid_ch = out_ch
    ks = jax.random.split(key, 6)

    def conv_init(kw_, kb_, cout, cin):
        std = 1.0 / math.sqrt(cin * 9)
        w = std * jax.random.normal(kw_, (cout, cin, 3, 3), jnp.float32)
        b = std * jax.random.normal(kb_, (cout,), jnp.float32)
        return w, b

    def bn_init(k, c):
        k1, k2, k3, k4 = jax.random.split(k, 4)
        gamma = 1.0 + 0.1 * jax.random.normal(k1, (c,), jnp.float32)
        beta = 0.1 * jax.random.normal(k2, (c,), jnp.float32)
        rm = 0.1 * jax.random.normal(k3, (c,), jnp.float32)
        rv = jnp.abs(1.0 + 0.1 * jax.random.normal(k4, (c,), jnp.float32))
        return (gamma, beta, rm, rv)

    w1, b1 = conv_init(ks[0], ks[1], mid_ch, in_ch)
    w2, b2 = conv_init(ks[2], ks[3], out_ch, mid_ch)
    return {"w1": w1, "b1": b1, "bn1": bn_init(ks[4], mid_ch),
            "w2": w2, "b2": b2, "bn2": bn_init(ks[5], out_ch)}


def _reference_double_conv(x_nhwc, p):
    def conv_bn_relu(x, w, b, bn):
        gamma, beta, rm, rv = bn
        y = lax.conv_general_dilated(
            x, jnp.transpose(w, (2, 3, 1, 0)), window_strides=(1, 1), padding="SAME",
            dimension_numbers=("NHWC", "HWIO", "NHWC"))
        y = y + b
        y = (y - rm) * (gamma * lax.rsqrt(rv + 1e-5)) + beta
        return jnp.maximum(y, 0.0)

    h = conv_bn_relu(x_nhwc, p["w1"], p["b1"], p["bn1"])
    return conv_bn_relu(h, p["w2"], p["b2"], p["bn2"])


def _check(out, x, params, tol):
    ref = jnp.transpose(
        _reference_double_conv(jnp.transpose(x, (0, 2, 3, 1)), params), (0, 3, 1, 2))
    if not bool(jnp.allclose(out, ref, rtol=tol, atol=tol)):
        raise AssertionError(
            f"mismatch vs reference, max abs err {float(jnp.max(jnp.abs(out - ref)))}")


if __name__ == "__main__":
    key = jax.random.PRNGKey(0)
    kx, kp, kx2, kp2 = jax.random.split(key, 4)

    # Primary test: small channels (Cin <= 64 -> folded-K GEMM path for both layers).
    x = jax.random.normal(kx, (2, 4, 16, 16), jnp.float32)   # NCHW input
    params = make_double_conv_params(kp, in_ch=4, out_ch=32)
    fwd = jax.jit(lambda a: double_conv(a, params))
    out = jax.block_until_ready(fwd(x))
    assert out.shape == (2, 32, 16, 16), out.shape
    assert out.dtype == jnp.float32
    _check(out, x, params, tol=5e-2)   # bf16 MXU inputs, f32 accumulate

    # Secondary test: larger channels (Cin > 64 -> direct 3-view conv path).
    x2 = jax.random.normal(kx2, (1, 96, 8, 8), jnp.float32)
    params2 = make_double_conv_params(kp2, in_ch=96, out_ch=96)
    fwd2 = jax.jit(lambda a: double_conv(a, params2))
    out2 = jax.block_until_ready(fwd2(x2))
    assert out2.shape == (1, 96, 8, 8), out2.shape
    _check(out2, x2, params2, tol=1e-1)

    print("KERNEL_OK")
</pallas_src>

<mosaic_0001>
module attributes {stable_mosaic.version = 11 : i64} {
  func.func @_gemm_bias_act_kernel(%arg0: i32, %arg1: i32, %arg2: memref<256x128xbf16, #tpu.memory_space<vmem>>, %arg3: memref<128x128xbf16, #tpu.memory_space<vmem>>, %arg4: memref<1x128xf32, #tpu.memory_space<vmem>>, %arg5: memref<256x128xbf16, #tpu.memory_space<vmem>>) attributes {dimension_semantics = [#tpu.dimension_semantics<parallel>, #tpu.dimension_semantics<parallel>], iteration_bounds = array<i64: 2, 1>, scalar_prefetch = 0 : i64, scratch_operands = 0 : i64, tpu.core_type = #tpu.core_type<tc>, window_params = [{transform_indices = @transform_0, window_bounds = array<i64: 256, 128>}, {transform_indices = @transform_1, window_bounds = array<i64: 128, 128>}, {transform_indices = @transform_2, window_bounds = array<i64: 1, 128>}, {transform_indices = @transform_3, window_bounds = array<i64: 256, 128>}]} {
    %c0 = arith.constant 0 : index
    %c0_0 = arith.constant 0 : index
    %0 = vector.load %arg2[%c0, %c0_0] : memref<256x128xbf16, #tpu.memory_space<vmem>>, vector<256x128xbf16>
    %c0_1 = arith.constant 0 : index
    %c0_2 = arith.constant 0 : index
    %1 = vector.load %arg3[%c0_1, %c0_2] : memref<128x128xbf16, #tpu.memory_space<vmem>>, vector<128x128xbf16>
    %cst = arith.constant dense<0.000000e+00> : vector<256x128xf32>
    %2 = tpu.matmul %0, %1, %cst {dimension_numbers = #tpu.dot_dimension_numbers<[1], [0], [0], [1], [0, 0, 1, 1], [], []>} : vector<256x128xbf16>, vector<128x128xbf16>, vector<256x128xf32> -> vector<256x128xf32>
    %c0_3 = arith.constant 0 : index
    %c0_4 = arith.constant 0 : index
    %3 = vector.load %arg4[%c0_3, %c0_4] : memref<1x128xf32, #tpu.memory_space<vmem>>, vector<1x128xf32>
    %4 = vector.broadcast %3 : vector<1x128xf32> to vector<256x128xf32>
    %5 = arith.addf %2, %4 : vector<256x128xf32>
    %cst_5 = arith.constant 0.000000e+00 : f32
    %6 = vector.broadcast %cst_5 : f32 to vector<256x128xf32>
    %7 = arith.maximumf %5, %6 : vector<256x128xf32>
    %8 = arith.truncf %7 : vector<256x128xf32> to vector<256x128xbf16>
    %c0_6 = arith.constant 0 : index
    %c0_7 = arith.constant 0 : index
    %9 = vector.load %arg5[%c0_6, %c0_7] : memref<256x128xbf16, #tpu.memory_space<vmem>>, vector<256x128xbf16>
    tpu.vector_store %arg5[%c0_6, %c0_7], %8 {strides = array<i32>} : memref<256x128xbf16, #tpu.memory_space<vmem>>, vector<256x128xbf16>,
    return
  }
  func.func @transform_0(%arg0: i32, %arg1: i32) -> (i32, i32) {
    %c0_i32 = arith.constant 0 : i32
    %c0_i32_0 = arith.constant 0 : i32
    return %arg0, %c0_i32 : i32, i32
  }
  func.func @transform_1(%arg0: i32, %arg1: i32) -> (i32, i32) {
    %c0_i32 = arith.constant 0 : i32
    %c0_i32_0 = arith.constant 0 : i32
    return %c0_i32, %arg1 : i32, i32
  }
  func.func @transform_2(%arg0: i32, %arg1: i32) -> (i32, i32) {
    %c0_i32 = arith.constant 0 : i32
    %c0_i32_0 = arith.constant 0 : i32
    return %c0_i32, %arg1 : i32, i32
  }
  func.func @transform_3(%arg0: i32, %arg1: i32) -> (i32, i32) {
    %c0_i32 = arith.constant 0 : i32
    return %arg0, %arg1 : i32, i32
  }
}

module attributes {stable_mosaic.version = 11 : i64} {
  func.func @_gemm_bias_act_kernel(%arg0: i32, %arg1: i32, %arg2: memref<256x384xbf16, #tpu.memory_space<vmem>>, %arg3: memref<384x128xbf16, #tpu.memory_space<vmem>>, %arg4: memref<1x128xf32, #tpu.memory_space<vmem>>, %arg5: memref<256x128xf32, #tpu.memory_space<vmem>>) attributes {dimension_semantics = [#tpu.dimension_semantics<parallel>, #tpu.dimension_semantics<parallel>], iteration_bounds = array<i64: 2, 1>, scalar_prefetch = 0 : i64, scratch_operands = 0 : i64, tpu.core_type = #tpu.core_type<tc>, window_params = [{transform_indices = @transform_0, window_bounds = array<i64: 256, 384>}, {transform_indices = @transform_1, window_bounds = array<i64: 384, 128>}, {transform_indices = @transform_2, window_bounds = array<i64: 1, 128>}, {transform_indices = @transform_3, window_bounds = array<i64: 256, 128>}]} {
    %c0 = arith.constant 0 : index
    %c0_0 = arith.constant 0 : index
    %0 = vector.load %arg2[%c0, %c0_0] : memref<256x384xbf16, #tpu.memory_space<vmem>>, vector<256x384xbf16>
    %c0_1 = arith.constant 0 : index
    %c0_2 = arith.constant 0 : index
    %1 = vector.load %arg3[%c0_1, %c0_2] : memref<384x128xbf16, #tpu.memory_space<vmem>>, vector<384x128xbf16>
    %cst = arith.constant dense<0.000000e+00> : vector<256x128xf32>
    %2 = tpu.matmul %0, %1, %cst {dimension_numbers = #tpu.dot_dimension_numbers<[1], [0], [0], [1], [0, 0, 1, 1], [], []>} : vector<256x384xbf16>, vector<384x128xbf16>, vector<256x128xf32> -> vector<256x128xf32>
    %c0_3 = arith.constant 0 : index
    %c0_4 = arith.constant 0 : index
    %3 = vector.load %arg4[%c0_3, %c0_4] : memref<1x128xf32, #tpu.memory_space<vmem>>, vector<1x128xf32>
    %4 = vector.broadcast %3 : vector<1x128xf32> to vector<256x128xf32>
    %5 = arith.addf %2, %4 : vector<256x128xf32>
    %cst_5 = arith.constant 0.000000e+00 : f32
    %6 = vector.broadcast %cst_5 : f32 to vector<256x128xf32>
    %7 = arith.maximumf %5, %6 : vector<256x128xf32>
    %c0_6 = arith.constant 0 : index
    %c0_7 = arith.constant 0 : index
    %8 = vector.load %arg5[%c0_6, %c0_7] : memref<256x128xf32, #tpu.memory_space<vmem>>, vector<256x128xf32>
    tpu.vector_store %arg5[%c0_6, %c0_7], %7 {strides = array<i32>} : memref<256x128xf32, #tpu.memory_space<vmem>>, vector<256x128xf32>,
    return
  }
  func.func @transform_0(%arg0: i32, %arg1: i32) -> (i32, i32) {
    %c0_i32 = arith.constant 0 : i32
    %c0_i32_0 = arith.constant 0 : i32
    return %arg0, %c0_i32 : i32, i32
  }
  func.func @transform_1(%arg0: i32, %arg1: i32) -> (i32, i32) {
    %c0_i32 = arith.constant 0 : i32
    %c0_i32_0 = arith.constant 0 : i32
    return %c0_i32, %arg1 : i32, i32
  }
  func.func @transform_2(%arg0: i32, %arg1: i32) -> (i32, i32) {
    %c0_i32 = arith.constant 0 : i32
    %c0_i32_0 = arith.constant 0 : i32
    return %c0_i32, %arg1 : i32, i32
  }
  func.func @transform_3(%arg0: i32, %arg1: i32) -> (i32, i32) {
    %c0_i32 = arith.constant 0 : i32
    return %arg0, %arg1 : i32, i32
  }
}

</mosaic_0001>

<llo_original>
// kernel: _lambda_.2
$region0: #{_lambda_.2}
  #allocation0 [shape = 'u32[]', space=smem, size = 0x4, offset = 0x4, fixed_abs, tag = 'smem constant byte address 0x4 - core index']
  #allocation1 [shape = 'u32[144,128]{1,0:T(1,128)}', space=vmem, size = 0x12000, scoped, tag = 'internal scratch']
  %s0 = inlined_call_operand.vmem [shape: bf16[512,128], index: 0, kind: input, shape index: {}]
  %s1 = inlined_call_operand.vmem [shape: bf16[128,128], index: 1, kind: input, shape index: {}]
  %s2 = inlined_call_operand.vmem [shape: f32[1,128], index: 2, kind: input, shape index: {}]
  %s3 = inlined_call_operand.vmem [shape: bf16[512,128], index: 3, kind: output, shape index: {}]
  %s4 = sld [smem:[#allocation0]]
  $region45: #{_lambda_.2} parent=0
    _
  %s6 = ssub.s32 1, %s4
  %s7 = scalar_select 0, %s6, %s4
  loop: start=0, step=1, limit=4
  $region2: #{_lambda_.2} parent=0 // loop_pre_header
    _
  $region3: #{_lambda_.2} parent=0 // loop_header
    %s9 = sphi 0, %s13
    %p10 = scmp.ge.s32.totalorder %s9, 4
    %s16 = sphi 0, %s28
    %s17 = sphi 0, %s24
    %s18 = sphi 0, %s16
    %s19 = sphi 0, %s17
    %s20 = sphi 0, %s18
    %s21 = sphi 0, %s19
    %s31 = sphi 0, %s33
    %s34 = sphi 0, %s31
    %s35 = sphi 0, %s34
    %s51 = sphi 0, %s35
    %s57 = sphi 0, %s59
    %s60 = sphi 0, %s57
    %s61 = sphi 0, %s60
    %s77 = sphi 0, %s61
    %s83 = sphi 0, %s85
    %s86 = sphi 0, %s83
    %s87 = sphi 0, %s86
    %s103 = sphi 0, %s87
    %s111 = sphi 0, %s113
    %s114 = sphi 0, %s111
    %s115 = sphi 0, %s114
    %s131 = sphi 0, %s115
  $region4: #{_lambda_.2} parent=0 // loop_header_branch
    %12 = sbr.rel (%p10) target = $region8
  $region5: #{_lambda_.2} parent=0 // loop_body
    %s14 = ssub.s32 %s9, 1
    %s15 = ssub.s32 %s9, 2
    %s22 = sadd.s32 1, %s17
    %p23 = scmp.ge.s32.totalorder %s22, 1
    %s24 = scalar_select %p23, 0, %s22
    %s25 = sadd.s32 1, %s16
    %s26 = scalar_select %p23, %s25, %s16
    %p27 = scmp.ge.s32.totalorder %s26, 2
    %s28 = scalar_select %p27, 0, %s26
    %s29 = ssub.s32 %s16, %s28
    %p30 = scmp.eq.s32.totalorder %s29, 0
    %s32 = sadd.s32 %s31, 1
    %s33 = scalar_select %p30, %s31, %s32
    %p36 = pneg %p30
    %p37 = scmp.eq.s32.totalorder %s9, 1
    %p38 = por %p36, %p37
    %p39 = scmp.ne.s32.totalorder %s31, %s34
    %p40 = scmp.eq.s32.totalorder %s9, 0
    %p41 = por %p39, %p40
    %p42 = scmp.ne.s32.totalorder %s31, %s34
    %p43 = scmp.eq.s32.totalorder %s14, 1
    %p44 = por %p42, %p43
    %p45 = scmp.ne.s32.totalorder %s34, %s35
    %p46 = scmp.eq.s32.totalorder %s14, 0
    %p47 = por %p45, %p46
    %p48 = scmp.ne.s32.totalorder %s34, %s35
    %p49 = scmp.eq.s32.totalorder %s15, 1
    %p50 = por %p48, %p49
    %p52 = scmp.ne.s32.totalorder %s35, %s51
    %p53 = scmp.eq.s32.totalorder %s15, 0
    %p54 = por %p52, %p53
    %s55 = ssub.s32 %s17, %s24
    %p56 = scmp.eq.s32.totalorder %s55, 0
    %s58 = sadd.s32 %s57, 1
    %s59 = scalar_select %p56, %s57, %s58
    %p62 = pneg %p56
    %p63 = scmp.eq.s32.totalorder %s9, 1
    %p64 = por %p62, %p63
    %p65 = scmp.ne.s32.totalorder %s57, %s60
    %p66 = scmp.eq.s32.totalorder %s9, 0
    %p67 = por %p65, %p66
    %p68 = scmp.ne.s32.totalorder %s57, %s60
    %p69 = scmp.eq.s32.totalorder %s14, 1
    %p70 = por %p68, %p69
    %p71 = scmp.ne.s32.totalorder %s60, %s61
    %p72 = scmp.eq.s32.totalorder %s14, 0
    %p73 = por %p71, %p72
    %p74 = scmp.ne.s32.totalorder %s60, %s61
    %p75 = scmp.eq.s32.totalorder %s15, 1
    %p76 = por %p74, %p75
    %p78 = scmp.ne.s32.totalorder %s61, %s77
    %p79 = scmp.eq.s32.totalorder %s15, 0
    %p80 = por %p78, %p79
    %s81 = ssub.s32 %s17, %s24
    %p82 = scmp.eq.s32.totalorder %s81, 0
    %s84 = sadd.s32 %s83, 1
    %s85 = scalar_select %p82, %s83, %s84
    %p88 = pneg %p82
    %p89 = scmp.eq.s32.totalorder %s9, 1
    %p90 = por %p88, %p89
    %p91 = scmp.ne.s32.totalorder %s83, %s86
    %p92 = scmp.eq.s32.totalorder %s9, 0
    %p93 = por %p91, %p92
    %p94 = scmp.ne.s32.totalorder %s83, %s86
    %p95 = scmp.eq.s32.totalorder %s14, 1
    %p96 = por %p94, %p95
    %p97 = scmp.ne.s32.totalorder %s86, %s87
    %p98 = scmp.eq.s32.totalorder %s14, 0
    %p99 = por %p97, %p98
    %p100 = scmp.ne.s32.totalorder %s86, %s87
    %p101 = scmp.eq.s32.totalorder %s15, 1
    %p102 = por %p100, %p101
    %p104 = scmp.ne.s32.totalorder %s87, %s103
    %p105 = scmp.eq.s32.totalorder %s15, 0
    %p106 = por %p104, %p105
    %s107 = ssub.s32 %s16, %s28
    %s108 = ssub.s32 %s17, %s24
    %s109 = sor.u32 %s107, %s108
    %p110 = scmp.eq.s32.totalorder %s109, 0
    %s112 = sadd.s32 %s111, 1
    %s113 = scalar_select %p110, %s111, %s112
    %p116 = pneg %p110
    %p117 = scmp.eq.s32.totalorder %s9, 1
    %p118 = por %p116, %p117
    %p119 = scmp.ne.s32.totalorder %s111, %s114
    %p120 = scmp.eq.s32.totalorder %s9, 0
    %p121 = por %p119, %p120
    %p122 = scmp.ne.s32.totalorder %s111, %s114
    %p123 = scmp.eq.s32.totalorder %s14, 1
    %p124 = por %p122, %p123
    %p125 = scmp.ne.s32.totalorder %s114, %s115
    %p126 = scmp.eq.s32.totalorder %s14, 0
    %p127 = por %p125, %p126
    %p128 = scmp.ne.s32.totalorder %s114, %s115
    %p129 = scmp.eq.s32.totalorder %s15, 1
    %p130 = por %p128, %p129
    %p132 = scmp.ne.s32.totalorder %s115, %s131
    %p133 = scmp.eq.s32.totalorder %s15, 0
    %p134 = por %p132, %p133
    %p135 = scmp.le.s32.totalorder 1, %s9
    %p136 = scmp.lt.s32.totalorder %s9, 3
    %p137 = pnand %p135, %p136
    %p138 = pneg %p137
    // Predicated region
    $region9: #{_lambda_.2} parent=5 // pred_check
      _
    $region10: #{_lambda_.2} parent=5 // pred_check_branch
      %140 = sbr.rel (%p137) target = $region12
    $region11: #{_lambda_.2} parent=5 // pred_region
      %s141 = ssub.s32 %s9, 1
      // Predicated region
      $region13: #{_lambda_.2} parent=11 // pred_check
        %p142 = pneg %p73
      $region14: #{_lambda_.2} parent=11 // pred_check_branch
        %144 = sbr.rel (%p142) target = $region16
      $region15: #{_lambda_.2} parent=11 // pred_region
        %p145 = scmp.lt.s32.totalorder %s19, 0
        %s146 = scalar_select %p145, %s19, 0
        %s147 = smul.addr %s146, 4
        %s148 = scalar_lea.vmem %s1, %s147
      $region16: #{_lambda_.2} parent=11 // pred_fallthru
        _
      // Predicated region
      $region17: #{_lambda_.2} parent=11 // pred_check
        %p149 = pneg %p99
      $region18: #{_lambda_.2} parent=11 // pred_check_branch
        %151 = sbr.rel (%p149) target = $region20
      $region19: #{_lambda_.2} parent=11 // pred_region
        %p152 = scmp.lt.s32.totalorder %s19, 0
        %s153 = scalar_select %p152, %s19, 0
        %s154 = scalar_lea.vmem %s2, %s153
      $region20: #{_lambda_.2} parent=11 // pred_fallthru
        _
    $region12: #{_lambda_.2} parent=5 // pred_fallthru
      _
    %p155 = scmp.lt.s32.totalorder %s9, 2
    // Predicated region
    $region21: #{_lambda_.2} parent=5 // pred_check
      %p156 = pneg %p155
    $region22: #{_lambda_.2} parent=5 // pred_check_branch
      %158 = sbr.rel (%p156) target = $region24
    $region23: #{_lambda_.2} parent=5 // pred_region
      // Predicated region
      $region25: #{_lambda_.2} parent=23 // pred_check
        %p159 = pneg %p41
      $region26: #{_lambda_.2} parent=23 // pred_check_branch
        %161 = sbr.rel (%p159) target = $region28
      $region27: #{_lambda_.2} parent=23 // pred_region
        %s162 = smul.u32 32, %s16
        %p163 = scmp.lt.s32.totalorder %s162, 63
        %s164 = scalar_select %p163, %s162, 63
        %s165 = smul.addr %s164, 4
        %s166 = scalar_lea.vmem %s0, %s165
        %s167 = smul.u32 32, %s16
      $region28: #{_lambda_.2} parent=23 // pred_fallthru
        _
    $region24: #{_lambda_.2} parent=5 // pred_fallthru
      _
    %p168 = scmp.le.s32.totalorder 1, %s9
    %p169 = scmp.lt.s32.totalorder %s9, 3
    %p170 = pnand %p168, %p169
    %p171 = pneg %p170
    // Predicated region
    $region29: #{_lambda_.2} parent=5 // pred_check
      _
    $region30: #{_lambda_.2} parent=5 // pred_check_branch
      %173 = sbr.rel (%p170) target = $region32
    $region31: #{_lambda_.2} parent=5 // pred_region
      %s174 = ssub.s32 %s9, 1
      %s175 = smul.u32 32, %s18
      %p176 = scmp.lt.s32.totalorder %s175, 63
      %s177 = scalar_select %p176, %s175, 63
      %s178 = smul.addr %s177, 4
      %s179 = scalar_lea.vmem %s0, %s178
      %p180 = pneg %p47
      %p181 = pneg %p44
      %p182 = scmp.lt.s32.totalorder %s19, 0
      %s183 = scalar_select %p182, %s19, 0
      %s184 = smul.addr %s183, 4
      %s185 = scalar_lea.vmem %s1, %s184
      %p186 = pneg %p73
      %p187 = pneg %p70
      %p188 = scmp.lt.s32.totalorder %s19, 0
      %s189 = scalar_select %p188, %s19, 0
      %s190 = scalar_lea.vmem %s2, %s189
      %p191 = pneg %p99
      %p192 = pneg %p96
      %p193 = pneg %p127
      %p194 = pneg %p124
      %s195 = smul.u32 32, %s18
      %p196 = scmp.lt.s32.totalorder %s195, 63
      %s197 = scalar_select %p196, %s195, 63
      %p198 = scmp.lt.s32.totalorder %s19, 0
      %s199 = scalar_select %p198, %s19, 0
      %s200 = sadd.s32 %s199, %s197
      %s201 = smul.addr %s200, 4
      %s202 = scalar_lea.vmem %s3, %s201
      %s203 = smul.u32 32, %s18
      %p204 = scmp.lt.s32.totalorder %s203, 63
      %s205 = scalar_select %p204, %s203, 63
      %s206 = smul.addr %s205, 4
      %s207 = scalar_lea.vmem %s0, %s206
      %s208 = smul.u32 32, %s18
      %p209 = scmp.lt.s32.totalorder %s19, 0
      %s210 = scalar_select %p209, %s19, 0
      %s211 = smul.addr %s210, 4
      %s212 = scalar_lea.vmem %s1, %s211
      %p213 = scmp.lt.s32.totalorder %s19, 0
      %s214 = scalar_select %p213, %s19, 0
      %s215 = scalar_lea.vmem %s2, %s214
      %s216 = smul.u32 32, %s18
      %p217 = scmp.lt.s32.totalorder %s216, 63
      %s218 = scalar_select %p217, %s216, 63
      %p219 = scmp.lt.s32.totalorder %s19, 0
      %s220 = scalar_select %p219, %s19, 0
      %s221 = sadd.s32 %s220, %s218
      %s222 = smul.addr %s221, 4
      %s223 = scalar_lea.vmem %s3, %s222
      %s224 = smul.u32 32, %s18
      %v226 = vld [vmem:[%s207] sm:$0xf]
      %v227 = vld [vmem:[%s207 + $0x4] sm:$0xf]
      %v228 = vld [vmem:[%s207 + $0x8] sm:$0xf]
      %v229 = vld [vmem:[%s207 + $0xc] sm:$0xf]
      %v230 = vld [vmem:[%s207 + $0x10] sm:$0xf]
      %v231 = vld [vmem:[%s207 + $0x14] sm:$0xf]
      %v232 = vld [vmem:[%s207 + $0x18] sm:$0xf]
      %v233 = vld [vmem:[%s207 + $0x1c] sm:$0xf]
      %v234 = vld [vmem:[%s207 + $0x20] sm:$0xf]
      %v235 = vld [vmem:[%s207 + $0x24] sm:$0xf]
      %v236 = vld [vmem:[%s207 + $0x28] sm:$0xf]
      %v237 = vld [vmem:[%s207 + $0x2c] sm:$0xf]
      %v238 = vld [vmem:[%s207 + $0x30] sm:$0xf]
      %v239 = vld [vmem:[%s207 + $0x34] sm:$0xf]
      %v240 = vld [vmem:[%s207 + $0x38] sm:$0xf]
      %v241 = vld [vmem:[%s207 + $0x3c] sm:$0xf]
      %v242 = vld [vmem:[%s207 + $0x40] sm:$0xf]
      %v243 = vld [vmem:[%s207 + $0x44] sm:$0xf]
      %v244 = vld [vmem:[%s207 + $0x48] sm:$0xf]
      %v245 = vld [vmem:[%s207 + $0x4c] sm:$0xf]
      %v246 = vld [vmem:[%s207 + $0x50] sm:$0xf]
      %v247 = vld [vmem:[%s207 + $0x54] sm:$0xf]
      %v248 = vld [vmem:[%s207 + $0x58] sm:$0xf]
      %v249 = vld [vmem:[%s207 + $0x5c] sm:$0xf]
      %v250 = vld [vmem:[%s207 + $0x60] sm:$0xf]
      %v251 = vld [vmem:[%s207 + $0x64] sm:$0xf]
      %v252 = vld [vmem:[%s207 + $0x68] sm:$0xf]
      %v253 = vld [vmem:[%s207 + $0x6c] sm:$0xf]
      %v254 = vld [vmem:[%s207 + $0x70] sm:$0xf]
      %v255 = vld [vmem:[%s207 + $0x74] sm:$0xf]
      %v256 = vld [vmem:[%s207 + $0x78] sm:$0xf]
      %v257 = vld [vmem:[%s207 + $0x7c] sm:$0xf]
      %v258 = vld [vmem:[%s212] sm:$0xf]
      %v259 = vld [vmem:[%s212 + $0x4] sm:$0xf]
      %v260 = vld [vmem:[%s212 + $0x8] sm:$0xf]
      %v261 = vld [vmem:[%s212 + $0xc] sm:$0xf]
      %v262 = vld [vmem:[%s212 + $0x10] sm:$0xf]
      %v263 = vld [vmem:[%s212 + $0x14] sm:$0xf]
      %v264 = vld [vmem:[%s212 + $0x18] sm:$0xf]
      %v265 = vld [vmem:[%s212 + $0x1c] sm:$0xf]
      %v266 = vld [vmem:[%s212 + $0x20] sm:$0xf]
      %v267 = vld [vmem:[%s212 + $0x24] sm:$0xf]
      %v268 = vld [vmem:[%s212 + $0x28] sm:$0xf]
      %v269 = vld [vmem:[%s212 + $0x2c] sm:$0xf]
      %v270 = vld [vmem:[%s212 + $0x30] sm:$0xf]
      %v271 = vld [vmem:[%s212 + $0x34] sm:$0xf]
      %v272 = vld [vmem:[%s212 + $0x38] sm:$0xf]
      %v273 = vld [vmem:[%s212 + $0x3c] sm:$0xf]
      %v274 = vld [vmem:[%s215] sm:$0x1]
      %v276 = vlaneseq
      %v277 = vshrl.u32 %v276, 7
      %v278 = vsub.s32 0, %v277
      %v279 = vrot.slane %v274, %v278
      %v313 = vunpack.c.l.b16 %v226
      %v314 = vunpack.c.l.b16 %v227
      %v315 = vunpack.c.l.b16 %v228
      %v316 = vunpack.c.l.b16 %v229
      %v317 = vunpack.c.l.b16 %v230
      %v318 = vunpack.c.l.b16 %v231
      %v319 = vunpack.c.l.b16 %v232
      %v320 = vunpack.c.l.b16 %v233
      %v321 = vunpack.c.l.b16 %v234
      %v322 = vunpack.c.l.b16 %v235
      %v323 = vunpack.c.l.b16 %v236
      %v324 = vunpack.c.l.b16 %v237
      %v325 = vunpack.c.l.b16 %v238
      %v326 = vunpack.c.l.b16 %v239
      %v327 = vunpack.c.l.b16 %v240
      %v328 = vunpack.c.l.b16 %v241
      %v329 = vunpack.c.l.b16 %v242
      %v330 = vunpack.c.l.b16 %v243
      %v331 = vunpack.c.l.b16 %v244
      %v332 = vunpack.c.l.b16 %v245
      %v333 = vunpack.c.l.b16 %v246
      %v334 = vunpack.c.l.b16 %v247
      %v335 = vunpack.c.l.b16 %v248
      %v336 = vunpack.c.l.b16 %v249
      %v337 = vunpack.c.l.b16 %v250
      %v338 = vunpack.c.l.b16 %v251
      %v339 = vunpack.c.l.b16 %v252
      %v340 = vunpack.c.l.b16 %v253
      %v341 = vunpack.c.l.b16 %v254
      %v342 = vunpack.c.l.b16 %v255
      %v343 = vunpack.c.l.b16 %v256
      %v344 = vunpack.c.l.b16 %v257
      %v345 = vpack.c.b16 %v314, %v313
      %v346 = vpack.c.b16 %v316, %v315
      %v347 = vpack.c.b16 %v318, %v317
      %v348 = vpack.c.b16 %v320, %v319
      %v349 = vpack.c.b16 %v322, %v321
      %v350 = vpack.c.b16 %v324, %v323
      %v351 = vpack.c.b16 %v326, %v325
      %v352 = vpack.c.b16 %v328, %v327
      %v353 = vpack.c.b16 %v330, %v329
      %v354 = vpack.c.b16 %v332, %v331
      %v355 = vpack.c.b16 %v334, %v333
      %v356 = vpack.c.b16 %v336, %v335
      %v357 = vpack.c.b16 %v338, %v337
      %v358 = vpack.c.b16 %v340, %v339
      %v359 = vpack.c.b16 %v342, %v341
      %v360 = vpack.c.b16 %v344, %v343
      %v393 = vunpack.c.l.b16 %v258
      %v394 = vunpack.c.l.b16 %v259
      %v395 = vunpack.c.l.b16 %v260
      %v396 = vunpack.c.l.b16 %v261
      %v397 = vunpack.c.l.b16 %v262
      %v398 = vunpack.c.l.b16 %v263
      %v399 = vunpack.c.l.b16 %v264
      %v400 = vunpack.c.l.b16 %v265
      %v401 = vunpack.c.l.b16 %v266
      %v402 = vunpack.c.l.b16 %v267
      %v403 = vunpack.c.l.b16 %v268
      %v404 = vunpack.c.l.b16 %v269
      %v405 = vunpack.c.l.b16 %v270
      %v406 = vunpack.c.l.b16 %v271
      %v407 = vunpack.c.l.b16 %v272
      %v408 = vunpack.c.l.b16 %v273
      %v409 = vpack.c.b16 %v394, %v393
      %v410 = vpack.c.b16 %v396, %v395
      %v411 = vpack.c.b16 %v398, %v397
      %v412 = vpack.c.b16 %v400, %v399
      %v413 = vpack.c.b16 %v402, %v401
      %v414 = vpack.c.b16 %v404, %v403
      %v415 = vpack.c.b16 %v406, %v405
      %v416 = vpack.c.b16 %v408, %v407
      %425 = vmatprep.subr.bf16.mxu0 0
      %426 = vmatpush1.bf16.msra.mxu0 %v416
      %427 = vmatprep.subr.bf16.mxu0 0
      %428 = vmatpush1.bf16.msra.mxu0 %v415
      %429 = vmatprep.subr.bf16.mxu0 0
      %430 = vmatpush1.bf16.msra.mxu0 %v414
      %431 = vmatprep.subr.bf16.mxu0 0
      %432 = vmatpush1.bf16.msra.mxu0 %v413
      %433 = vmatprep.subr.bf16.mxu0 0
      %434 = vmatpush1.bf16.msra.mxu0 %v412
      %435 = vmatprep.subr.bf16.mxu0 0
      %436 = vmatpush1.bf16.msra.mxu0 %v411
      %437 = vmatprep.subr.bf16.mxu0 0
      %438 = vmatpush1.bf16.msra.mxu0 %v410
      %439 = vmatprep.subr.bf16.mxu0 0
      %440 = vmatpush1.bf16.msra.mxu0 %v409
      %441 = vmatprep.subr.bf16.mxu0 0
      %442 = vmatpush2.bf16.msra.mxu0 0
      %443 = vmatprep.subr.bf16.mxu0 0
      %444 = vmatpush2.bf16.msra.mxu0 0
      %445 = vmatprep.subr.bf16.mxu0 0
      %446 = vmatpush2.bf16.msra.mxu0 0
      %447 = vmatprep.subr.bf16.mxu0 0
      %448 = vmatpush2.bf16.msra.mxu0 0
      %449 = vmatprep.subr.bf16.mxu0 0
      %450 = vmatpush2.bf16.msra.mxu0 0
      %451 = vmatprep.subr.bf16.mxu0 0
      %452 = vmatpush2.bf16.msra.mxu0 0
      %453 = vmatprep.subr.bf16.mxu0 0
      %454 = vmatpush2.bf16.msra.mxu0 0
      %455 = vmatprep.subr.bf16.mxu0 0
      %456 = vmatpush2.bf16.msra.mxu0 0
      %457 = vmatprep.mubr.bf16.mxu0 0
      %458 = vmatmul.mubr.bf16.gmra.mxu0 %v345
      %v459 = vpop.f32.mrf.mxu0
      %v460 = vadd.f32 %v279, %v459
      %v461 = vpop.f32.mrf.mxu0
      %v462 = vpop.f32.mrf.mxu0
      %v463 = vadd.f32 %v279, %v462
      %v464 = vpop.f32.mrf.mxu0
      %465 = vmatprep.mubr.bf16.mxu0 0
      %466 = vmatmul.mubr.bf16.gmra.mxu0 %v346
      %v467 = vpop.f32.mrf.mxu0
      %v468 = vadd.f32 %v279, %v467
      %v469 = vpop.f32.mrf.mxu0
      %v470 = vpop.f32.mrf.mxu0
      %v471 = vadd.f32 %v279, %v470
      %v472 = vpop.f32.mrf.mxu0
      %473 = vmatprep.mubr.bf16.mxu0 0
      %474 = vmatmul.mubr.bf16.gmra.mxu0 %v347
      %v475 = vpop.f32.mrf.mxu0
      %v476 = vadd.f32 %v279, %v475
      %v477 = vpop.f32.mrf.mxu0
      %v478 = vpop.f32.mrf.mxu0
      %v479 = vadd.f32 %v279, %v478
      %v480 = vpop.f32.mrf.mxu0
      %481 = vmatprep.mubr.bf16.mxu0 0
      %482 = vmatmul.mubr.bf16.gmra.mxu0 %v348
      %v483 = vpop.f32.mrf.mxu0
      %v484 = vadd.f32 %v279, %v483
      %v485 = vpop.f32.mrf.mxu0
      %v486 = vpop.f32.mrf.mxu0
      %v487 = vadd.f32 %v279, %v486
      %v488 = vpop.f32.mrf.mxu0
      %489 = vmatprep.mubr.bf16.mxu0 0
      %490 = vmatmul.mubr.bf16.gmra.mxu0 %v349
      %v491 = vpop.f32.mrf.mxu0
      %v492 = vadd.f32 %v279, %v491
      %v493 = vpop.f32.mrf.mxu0
      %v494 = vpop.f32.mrf.mxu0
      %v495 = vadd.f32 %v279, %v494
      %v496 = vpop.f32.mrf.mxu0
      %497 = vmatprep.mubr.bf16.mxu0 0
      %498 = vmatmul.mubr.bf16.gmra.mxu0 %v350
      %v499 = vpop.f32.mrf.mxu0
      %v500 = vadd.f32 %v279, %v499
      %v501 = vpop.f32.mrf.mxu0
      %v502 = vpop.f32.mrf.mxu0
      %v503 = vadd.f32 %v279, %v502
      %v504 = vpop.f32.mrf.mxu0
      %505 = vmatprep.mubr.bf16.mxu0 0
      %506 = vmatmul.mubr.bf16.gmra.mxu0 %v351
      %v507 = vpop.f32.mrf.mxu0
      %v508 = vadd.f32 %v279, %v507
      %v509 = vpop.f32.mrf.mxu0
      %v510 = vpop.f32.mrf.mxu0
      %v511 = vadd.f32 %v279, %v510
      %v512 = vpop.f32.mrf.mxu0
      %513 = vmatprep.mubr.bf16.mxu0 0
      %514 = vmatmul.mubr.bf16.gmra.mxu0 %v352
      %v515 = vpop.f32.mrf.mxu0
      %v516 = vadd.f32 %v279, %v515
      %v517 = vpop.f32.mrf.mxu0
      %v518 = vpop.f32.mrf.mxu0
      %v519 = vadd.f32 %v279, %v518
      %v520 = vpop.f32.mrf.mxu0
      %521 = vmatprep.mubr.bf16.mxu0 0
      %522 = vmatmul.mubr.bf16.gmra.mxu0 %v353
      %v523 = vpop.f32.mrf.mxu0
      %v524 = vadd.f32 %v279, %v523
      %v525 = vpop.f32.mrf.mxu0
      %v526 = vpop.f32.mrf.mxu0
      %v527 = vadd.f32 %v279, %v526
      %v528 = vpop.f32.mrf.mxu0
      %529 = vmatprep.mubr.bf16.mxu0 0
      %530 = vmatmul.mubr.bf16.gmra.mxu0 %v354
      %v531 = vpop.f32.mrf.mxu0
      %v532 = vadd.f32 %v279, %v531
      %v533 = vpop.f32.mrf.mxu0
      %v534 = vpop.f32.mrf.mxu0
      %v535 = vadd.f32 %v279, %v534
      %v536 = vpop.f32.mrf.mxu0
      %537 = vmatprep.mubr.bf16.mxu0 0
      %538 = vmatmul.mubr.bf16.gmra.mxu0 %v355
      %v539 = vpop.f32.mrf.mxu0
      %v540 = vadd.f32 %v279, %v539
      %v541 = vpop.f32.mrf.mxu0
      %v542 = vpop.f32.mrf.mxu0
      %v543 = vadd.f32 %v279, %v542
      %v544 = vpop.f32.mrf.mxu0
      %545 = vmatprep.mubr.bf16.mxu0 0
      %546 = vmatmul.mubr.bf16.gmra.mxu0 %v356
      %v547 = vpop.f32.mrf.mxu0
      %v548 = vadd.f32 %v279, %v547
      %v549 = vpop.f32.mrf.mxu0
      %v550 = vpop.f32.mrf.mxu0
      %v551 = vadd.f32 %v279, %v550
      %v552 = vpop.f32.mrf.mxu0
      %553 = vmatprep.mubr.bf16.mxu0 0
      %554 = vmatmul.mubr.bf16.gmra.mxu0 %v357
      %v555 = vpop.f32.mrf.mxu0
      %v556 = vadd.f32 %v279, %v555
      %v557 = vpop.f32.mrf.mxu0
      %v558 = vpop.f32.mrf.mxu0
      %v559 = vadd.f32 %v279, %v558
      %v560 = vpop.f32.mrf.mxu0
      %561 = vmatprep.mubr.bf16.mxu0 0
      %562 = vmatmul.mubr.bf16.gmra.mxu0 %v358
      %v563 = vpop.f32.mrf.mxu0
      %v564 = vadd.f32 %v279, %v563
      %v565 = vpop.f32.mrf.mxu0
      %v566 = vpop.f32.mrf.mxu0
      %v567 = vadd.f32 %v279, %v566
      %v568 = vpop.f32.mrf.mxu0
      %569 = vmatprep.mubr.bf16.mxu0 0
      %570 = vmatmul.mubr.bf16.gmra.mxu0 %v359
      %v571 = vpop.f32.mrf.mxu0
      %v572 = vadd.f32 %v279, %v571
      %v573 = vpop.f32.mrf.mxu0
      %v574 = vpop.f32.mrf.mxu0
      %v575 = vadd.f32 %v279, %v574
      %v576 = vpop.f32.mrf.mxu0
      %577 = vmatprep.mubr.bf16.mxu0 0
      %578 = vmatmul.mubr.bf16.gmra.mxu0 %v360
      %v579 = vpop.f32.mrf.mxu0
      %v580 = vadd.f32 %v279, %v579
      %v581 = vpop.f32.mrf.mxu0
      %v582 = vpop.f32.mrf.mxu0
      %v583 = vadd.f32 %v279, %v582
      %v584 = vpop.f32.mrf.mxu0
      %585 = vdwg.mxu0
      %v586 = vmax.f32 %v460, 0.0
      %v587 = vmax.f32 %v463, 0.0
      %v588 = vmax.f32 %v468, 0.0
      %v589 = vmax.f32 %v471, 0.0
      %v590 = vmax.f32 %v476, 0.0
      %v591 = vmax.f32 %v479, 0.0
      %v592 = vmax.f32 %v484, 0.0
      %v593 = vmax.f32 %v487, 0.0
      %v594 = vmax.f32 %v492, 0.0
      %v595 = vmax.f32 %v495, 0.0
      %v596 = vmax.f32 %v500, 0.0
      %v597 = vmax.f32 %v503, 0.0
      %v598 = vmax.f32 %v508, 0.0
      %v599 = vmax.f32 %v511, 0.0
      %v600 = vmax.f32 %v516, 0.0
      %v601 = vmax.f32 %v519, 0.0
      %v602 = vmax.f32 %v524, 0.0
      %v603 = vmax.f32 %v527, 0.0
      %v604 = vmax.f32 %v532, 0.0
      %v605 = vmax.f32 %v535, 0.0
      %v606 = vmax.f32 %v540, 0.0
      %v607 = vmax.f32 %v543, 0.0
      %v608 = vmax.f32 %v548, 0.0
      %v609 = vmax.f32 %v551, 0.0
      %v610 = vmax.f32 %v556, 0.0
      %v611 = vmax.f32 %v559, 0.0
      %v612 = vmax.f32 %v564, 0.0
      %v613 = vmax.f32 %v567, 0.0
      %v614 = vmax.f32 %v572, 0.0
      %v615 = vmax.f32 %v575, 0.0
      %v616 = vmax.f32 %v580, 0.0
      %v617 = vmax.f32 %v583, 0.0
      %v618 = vpack.c.bf16 %v587, %v586
      %v619 = vpack.c.bf16 %v589, %v588
      %v620 = vpack.c.bf16 %v591, %v590
      %v621 = vpack.c.bf16 %v593, %v592
      %v622 = vpack.c.bf16 %v595, %v594
      %v623 = vpack.c.bf16 %v597, %v596
      %v624 = vpack.c.bf16 %v599, %v598
      %v625 = vpack.c.bf16 %v601, %v600
      %v626 = vpack.c.bf16 %v603, %v602
      %v627 = vpack.c.bf16 %v605, %v604
      %v628 = vpack.c.bf16 %v607, %v606
      %v629 = vpack.c.bf16 %v609, %v608
      %v630 = vpack.c.bf16 %v611, %v610
      %v631 = vpack.c.bf16 %v613, %v612
      %v632 = vpack.c.bf16 %v615, %v614
      %v633 = vpack.c.bf16 %v617, %v616
      %v650 = vunpack.c.l.b16 %v618
      %v651 = vunpack.c.h.b16 %v618
      %v652 = vunpack.c.l.b16 %v619
      %v653 = vunpack.c.h.b16 %v619
      %v654 = vunpack.c.l.b16 %v620
      %v655 = vunpack.c.h.b16 %v620
      %v656 = vunpack.c.l.b16 %v621
      %v657 = vunpack.c.h.b16 %v621
      %v658 = vunpack.c.l.b16 %v622
      %v659 = vunpack.c.h.b16 %v622
      %v660 = vunpack.c.l.b16 %v623
      %v661 = vunpack.c.h.b16 %v623
      %v662 = vunpack.c.l.b16 %v624
      %v663 = vunpack.c.h.b16 %v624
      %v664 = vunpack.c.l.b16 %v625
      %v665 = vunpack.c.h.b16 %v625
      %v666 = vunpack.c.l.b16 %v626
      %v667 = vunpack.c.h.b16 %v626
      %v668 = vunpack.c.l.b16 %v627
      %v669 = vunpack.c.h.b16 %v627
      %v670 = vunpack.c.l.b16 %v628
      %v671 = vunpack.c.h.b16 %v628
      %v672 = vunpack.c.l.b16 %v629
      %v673 = vunpack.c.h.b16 %v629
      %v674 = vunpack.c.l.b16 %v630
      %v675 = vunpack.c.h.b16 %v630
      %v676 = vunpack.c.l.b16 %v631
      %v677 = vunpack.c.h.b16 %v631
      %v678 = vunpack.c.l.b16 %v632
      %v679 = vunpack.c.h.b16 %v632
      %v680 = vunpack.c.l.b16 %v633
      %v681 = vunpack.c.h.b16 %v633
      %v682 = vpack.c.b16 %v650, %v650
      %v683 = vpack.c.b16 %v651, %v651
      %v684 = vpack.c.b16 %v652, %v652
      %v685 = vpack.c.b16 %v653, %v653
      %v686 = vpack.c.b16 %v654, %v654
      %v687 = vpack.c.b16 %v655, %v655
      %v688 = vpack.c.b16 %v656, %v656
      %v689 = vpack.c.b16 %v657, %v657
      %v690 = vpack.c.b16 %v658, %v658
      %v691 = vpack.c.b16 %v659, %v659
      %v692 = vpack.c.b16 %v660, %v660
      %v693 = vpack.c.b16 %v661, %v661
      %v694 = vpack.c.b16 %v662, %v662
      %v695 = vpack.c.b16 %v663, %v663
      %v696 = vpack.c.b16 %v664, %v664
      %v697 = vpack.c.b16 %v665, %v665
      %v698 = vpack.c.b16 %v666, %v666
      %v699 = vpack.c.b16 %v667, %v667
      %v700 = vpack.c.b16 %v668, %v668
      %v701 = vpack.c.b16 %v669, %v669
      %v702 = vpack.c.b16 %v670, %v670
      %v703 = vpack.c.b16 %v671, %v671
      %v704 = vpack.c.b16 %v672, %v672
      %v705 = vpack.c.b16 %v673, %v673
      %v706 = vpack.c.b16 %v674, %v674
      %v707 = vpack.c.b16 %v675, %v675
      %v708 = vpack.c.b16 %v676, %v676
      %v709 = vpack.c.b16 %v677, %v677
      %v710 = vpack.c.b16 %v678, %v678
      %v711 = vpack.c.b16 %v679, %v679
      %v712 = vpack.c.b16 %v680, %v680
      %v713 = vpack.c.b16 %v681, %v681
      %746 = vst [vmem:[%s223] sm:$0xf] %v682
      %747 = vst [vmem:[%s223 + $0x4] sm:$0xf] %v683
      %748 = vst [vmem:[%s223 + $0x8] sm:$0xf] %v684
      %749 = vst [vmem:[%s223 + $0xc] sm:$0xf] %v685
      %750 = vst [vmem:[%s223 + $0x10] sm:$0xf] %v686
      %751 = vst [vmem:[%s223 + $0x14] sm:$0xf] %v687
      %752 = vst [vmem:[%s223 + $0x18] sm:$0xf] %v688
      %753 = vst [vmem:[%s223 + $0x1c] sm:$0xf] %v689
      %754 = vst [vmem:[%s223 + $0x20] sm:$0xf] %v690
      %755 = vst [vmem:[%s223 + $0x24] sm:$0xf] %v691
      %756 = vst [vmem:[%s223 + $0x28] sm:$0xf] %v692
      %757 = vst [vmem:[%s223 + $0x2c] sm:$0xf] %v693
      %758 = vst [vmem:[%s223 + $0x30] sm:$0xf] %v694
      %759 = vst [vmem:[%s223 + $0x34] sm:$0xf] %v695
      %760 = vst [vmem:[%s223 + $0x38] sm:$0xf] %v696
      %761 = vst [vmem:[%s223 + $0x3c] sm:$0xf] %v697
      %762 = vst [vmem:[%s223 + $0x40] sm:$0xf] %v698
      %763 = vst [vmem:[%s223 + $0x44] sm:$0xf] %v699
      %764 = vst [vmem:[%s223 + $0x48] sm:$0xf] %v700
      %765 = vst [vmem:[%s223 + $0x4c] sm:$0xf] %v701
      %766 = vst [vmem:[%s223 + $0x50] sm:$0xf] %v702
      %767 = vst [vmem:[%s223 + $0x54] sm:$0xf] %v703
      %768 = vst [vmem:[%s223 + $0x58] sm:$0xf] %v704
      %769 = vst [vmem:[%s223 + $0x5c] sm:$0xf] %v705
      %770 = vst [vmem:[%s223 + $0x60] sm:$0xf] %v706
      %771 = vst [vmem:[%s223 + $0x64] sm:$0xf] %v707
      %772 = vst [vmem:[%s223 + $0x68] sm:$0xf] %v708
      %773 = vst [vmem:[%s223 + $0x6c] sm:$0xf] %v709
      %774 = vst [vmem:[%s223 + $0x70] sm:$0xf] %v710
      %775 = vst [vmem:[%s223 + $0x74] sm:$0xf] %v711
      %776 = vst [vmem:[%s223 + $0x78] sm:$0xf] %v712
      %777 = vst [vmem:[%s223 + $0x7c] sm:$0xf] %v713
      %s778 = smul.u32 32, %s18
      %p779 = scmp.lt.s32.totalorder %s778, 63
      %s780 = scalar_select %p779, %s778, 63
      %p781 = scmp.lt.s32.totalorder %s19, 0
      %s782 = scalar_select %p781, %s19, 0
      %s783 = sadd.s32 %s782, %s780
      %s784 = smul.addr %s783, 4
      %s785 = scalar_lea.vmem %s3, %s784
      // Predicated region
      $region33: #{_lambda_.2} parent=31 // pred_check
        %p786 = pneg %p124
      $region34: #{_lambda_.2} parent=31 // pred_check_branch
        %788 = sbr.rel (%p786) target = $region36
      $region35: #{_lambda_.2} parent=31 // pred_region
        %s789 = smul.u32 32, %s18
      $region36: #{_lambda_.2} parent=31 // pred_fallthru
        _
    $region32: #{_lambda_.2} parent=5 // pred_fallthru
      _
    %p790 = scmp.le.s32.totalorder 2, %s9
    // Predicated region
    $region37: #{_lambda_.2} parent=5 // pred_check
      %p791 = pneg %p790
    $region38: #{_lambda_.2} parent=5 // pred_check_branch
      %793 = sbr.rel (%p791) target = $region40
    $region39: #{_lambda_.2} parent=5 // pred_region
      %s794 = ssub.s32 %s9, 2
      // Predicated region
      $region41: #{_lambda_.2} parent=39 // pred_check
        %p795 = pneg %p130
      $region42: #{_lambda_.2} parent=39 // pred_check_branch
        %797 = sbr.rel (%p795) target = $region44
      $region43: #{_lambda_.2} parent=39 // pred_region
        %s798 = smul.u32 32, %s20
        %p799 = scmp.lt.s32.totalorder %s798, 63
        %s800 = scalar_select %p799, %s798, 63
        %p801 = scmp.lt.s32.totalorder %s21, 0
        %s802 = scalar_select %p801, %s21, 0
        %s803 = sadd.s32 %s802, %s800
        %s804 = smul.addr %s803, 4
        %s805 = scalar_lea.vmem %s3, %s804
      $region44: #{_lambda_.2} parent=39 // pred_fallthru
        _
    $region40: #{_lambda_.2} parent=5 // pred_fallthru
      _
  $region6: #{_lambda_.2} parent=0 // loop_footer
    %s13 = sadd.s32 1, %s9
  $region7: #{_lambda_.2} parent=0 // loop_footer_branch
    %8 = sbr.rel target = $region3
  $region8: #{_lambda_.2} parent=0 // loop_exit
    _

// kernel: _lambda_.3
$region0: #{_lambda_.3}
  #allocation0 [shape = 'u32[]', space=smem, size = 0x4, offset = 0x4, fixed_abs, tag = 'smem constant byte address 0x4 - core index']
  #allocation1 [shape = 'u32[144,128]{1,0:T(1,128)}', space=vmem, size = 0x12000, scoped, tag = 'internal scratch']
  %s0 = inlined_call_operand.vmem [shape: bf16[512,384], index: 0, kind: input, shape index: {}]
  %s1 = inlined_call_operand.vmem [shape: bf16[384,128], index: 1, kind: input, shape index: {}]
  %s2 = inlined_call_operand.vmem [shape: f32[1,128], index: 2, kind: input, shape index: {}]
  %s3 = inlined_call_operand.hbm [shape: f32[512,128], index: 3, kind: output, shape index: {}]
  %s4 = sld [smem:[#allocation0]]
  $region45: #{_lambda_.3} parent=0
    _
  %s6 = ssub.s32 1, %s4
  %s7 = scalar_select 0, %s6, %s4
  $region1: #{_lambda_.3} parent=0
    #allocation2 [shape = 'u8[262144]{0}', space=vmem, size = 0x40000, scoped, tag = 'output window, operand 0']
    #allocation3 [shape = 's32[2]{0}', space=sflag, size = 0x8, scoped, tag = 'scoped memory for _lambda_.3']
    %8 = vsyncpa [#allocation3], 0
    %s9 = scalar_lea.sflag [#allocation3], 1
    %10 = vsyncpa %s9, 0
    loop: start=0, step=1, limit=4
    $region2: #{_lambda_.3} parent=1 // loop_pre_header
      _
    $region3: #{_lambda_.3} parent=1 // loop_header
      %s12 = sphi 0, %s16
      %p13 = scmp.ge.s32.totalorder %s12, 4
      %s19 = sphi 0, %s31
      %s20 = sphi 0, %s27
      %s21 = sphi 0, %s19
      %s22 = sphi 0, %s20
      %s23 = sphi 0, %s21
      %s24 = sphi 0, %s22
      %s34 = sphi 0, %s36
      %s37 = sphi 0, %s34
      %s38 = sphi 0, %s37
      %s54 = sphi 0, %s38
      %s60 = sphi 0, %s62
      %s63 = sphi 0, %s60
      %s64 = sphi 0, %s63
      %s80 = sphi 0, %s64
      %s86 = sphi 0, %s88
      %s89 = sphi 0, %s86
      %s90 = sphi 0, %s89
      %s106 = sphi 0, %s90
      %s114 = sphi 0, %s116
      %s117 = sphi 0, %s114
      %s118 = sphi 0, %s117
      %s134 = sphi 0, %s118
    $region4: #{_lambda_.3} parent=1 // loop_header_branch
      %15 = sbr.rel (%p13) target = $region8
    $region5: #{_lambda_.3} parent=1 // loop_body
      %s17 = ssub.s32 %s12, 1
      %s18 = ssub.s32 %s12, 2
      %s25 = sadd.s32 1, %s20
      %p26 = scmp.ge.s32.totalorder %s25, 1
      %s27 = scalar_select %p26, 0, %s25
      %s28 = sadd.s32 1, %s19
      %s29 = scalar_select %p26, %s28, %s19
      %p30 = scmp.ge.s32.totalorder %s29, 2
      %s31 = scalar_select %p30, 0, %s29
      %s32 = ssub.s32 %s19, %s31
      %p33 = scmp.eq.s32.totalorder %s32, 0
      %s35 = sadd.s32 %s34, 1
      %s36 = scalar_select %p33, %s34, %s35
      %p39 = pneg %p33
      %p40 = scmp.eq.s32.totalorder %s12, 1
      %p41 = por %p39, %p40
      %p42 = scmp.ne.s32.totalorder %s34, %s37
      %p43 = scmp.eq.s32.totalorder %s12, 0
      %p44 = por %p42, %p43
      %p45 = scmp.ne.s32.totalorder %s34, %s37
      %p46 = scmp.eq.s32.totalorder %s17, 1
      %p47 = por %p45, %p46
      %p48 = scmp.ne.s32.totalorder %s37, %s38
      %p49 = scmp.eq.s32.totalorder %s17, 0
      %p50 = por %p48, %p49
      %p51 = scmp.ne.s32.totalorder %s37, %s38
      %p52 = scmp.eq.s32.totalorder %s18, 1
      %p53 = por %p51, %p52
      %p55 = scmp.ne.s32.totalorder %s38, %s54
      %p56 = scmp.eq.s32.totalorder %s18, 0
      %p57 = por %p55, %p56
      %s58 = ssub.s32 %s20, %s27
      %p59 = scmp.eq.s32.totalorder %s58, 0
      %s61 = sadd.s32 %s60, 1
      %s62 = scalar_select %p59, %s60, %s61
      %p65 = pneg %p59
      %p66 = scmp.eq.s32.totalorder %s12, 1
      %p67 = por %p65, %p66
      %p68 = scmp.ne.s32.totalorder %s60, %s63
      %p69 = scmp.eq.s32.totalorder %s12, 0
      %p70 = por %p68, %p69
      %p71 = scmp.ne.s32.totalorder %s60, %s63
      %p72 = scmp.eq.s32.totalorder %s17, 1
      %p73 = por %p71, %p72
      %p74 = scmp.ne.s32.totalorder %s63, %s64
      %p75 = scmp.eq.s32.totalorder %s17, 0
      %p76 = por %p74, %p75
      %p77 = scmp.ne.s32.totalorder %s63, %s64
      %p78 = scmp.eq.s32.totalorder %s18, 1
      %p79 = por %p77, %p78
      %p81 = scmp.ne.s32.totalorder %s64, %s80
      %p82 = scmp.eq.s32.totalorder %s18, 0
      %p83 = por %p81, %p82
      %s84 = ssub.s32 %s20, %s27
      %p85 = scmp.eq.s32.totalorder %s84, 0
      %s87 = sadd.s32 %s86, 1
      %s88 = scalar_select %p85, %s86, %s87
      %p91 = pneg %p85
      %p92 = scmp.eq.s32.totalorder %s12, 1
      %p93 = por %p91, %p92
      %p94 = scmp.ne.s32.totalorder %s86, %s89
      %p95 = scmp.eq.s32.totalorder %s12, 0
      %p96 = por %p94, %p95
      %p97 = scmp.ne.s32.totalorder %s86, %s89
      %p98 = scmp.eq.s32.totalorder %s17, 1
      %p99 = por %p97, %p98
      %p100 = scmp.ne.s32.totalorder %s89, %s90
      %p101 = scmp.eq.s32.totalorder %s17, 0
      %p102 = por %p100, %p101
      %p103 = scmp.ne.s32.totalorder %s89, %s90
      %p104 = scmp.eq.s32.totalorder %s18, 1
      %p105 = por %p103, %p104
      %p107 = scmp.ne.s32.totalorder %s90, %s106
      %p108 = scmp.eq.s32.totalorder %s18, 0
      %p109 = por %p107, %p108
      %s110 = ssub.s32 %s19, %s31
      %s111 = ssub.s32 %s20, %s27
      %s112 = sor.u32 %s110, %s111
      %p113 = scmp.eq.s32.totalorder %s112, 0
      %s115 = sadd.s32 %s114, 1
      %s116 = scalar_select %p113, %s114, %s115
      %p119 = pneg %p113
      %p120 = scmp.eq.s32.totalorder %s12, 1
      %p121 = por %p119, %p120
      %p122 = scmp.ne.s32.totalorder %s114, %s117
      %p123 = scmp.eq.s32.totalorder %s12, 0
      %p124 = por %p122, %p123
      %p125 = scmp.ne.s32.totalorder %s114, %s117
      %p126 = scmp.eq.s32.totalorder %s17, 1
      %p127 = por %p125, %p126
      %p128 = scmp.ne.s32.totalorder %s117, %s118
      %p129 = scmp.eq.s32.totalorder %s17, 0
      %p130 = por %p128, %p129
      %p131 = scmp.ne.s32.totalorder %s117, %s118
      %p132 = scmp.eq.s32.totalorder %s18, 1
      %p133 = por %p131, %p132
      %p135 = scmp.ne.s32.totalorder %s118, %s134
      %p136 = scmp.eq.s32.totalorder %s18, 0
      %p137 = por %p135, %p136
      %p138 = scmp.le.s32.totalorder 1, %s12
      %p139 = scmp.lt.s32.totalorder %s12, 3
      %p140 = pnand %p138, %p139
      %p141 = pneg %p140
      // Predicated region
      $region9: #{_lambda_.3} parent=5 // pred_check
        _
      $region10: #{_lambda_.3} parent=5 // pred_check_branch
        %143 = sbr.rel (%p140) target = $region12
      $region11: #{_lambda_.3} parent=5 // pred_region
        %s144 = ssub.s32 %s12, 1
        // Predicated region
        $region13: #{_lambda_.3} parent=11 // pred_check
          %p145 = pneg %p76
        $region14: #{_lambda_.3} parent=11 // pred_check_branch
          %147 = sbr.rel (%p145) target = $region16
        $region15: #{_lambda_.3} parent=11 // pred_region
          %p148 = scmp.lt.s32.totalorder %s22, 0
          %s149 = scalar_select %p148, %s22, 0
          %s150 = smul.addr %s149, 4
          %s151 = scalar_lea.vmem %s1, %s150
        $region16: #{_lambda_.3} parent=11 // pred_fallthru
          _
        // Predicated region
        $region17: #{_lambda_.3} parent=11 // pred_check
          %p152 = pneg %p102
        $region18: #{_lambda_.3} parent=11 // pred_check_branch
          %154 = sbr.rel (%p152) target = $region20
        $region19: #{_lambda_.3} parent=11 // pred_region
          %p155 = scmp.lt.s32.totalorder %s22, 0
          %s156 = scalar_select %p155, %s22, 0
          %s157 = scalar_lea.vmem %s2, %s156
        $region20: #{_lambda_.3} parent=11 // pred_fallthru
          _
      $region12: #{_lambda_.3} parent=5 // pred_fallthru
        _
      %p158 = scmp.lt.s32.totalorder %s12, 2
      // Predicated region
      $region21: #{_lambda_.3} parent=5 // pred_check
        %p159 = pneg %p158
      $region22: #{_lambda_.3} parent=5 // pred_check_branch
        %161 = sbr.rel (%p159) target = $region24
      $region23: #{_lambda_.3} parent=5 // pred_region
        // Predicated region
        $region25: #{_lambda_.3} parent=23 // pred_check
          %p162 = pneg %p44
        $region26: #{_lambda_.3} parent=23 // pred_check_branch
          %164 = sbr.rel (%p162) target = $region28
        $region27: #{_lambda_.3} parent=23 // pred_region
          %s165 = smul.u32 32, %s19
          %p166 = scmp.lt.s32.totalorder %s165, 63
          %s167 = scalar_select %p166, %s165, 63
          %s168 = smul.addr %s167, 3
          %s169 = smul.addr %s168, 4
          %s170 = scalar_lea.vmem %s0, %s169
          %s171 = smul.u32 32, %s19
        $region28: #{_lambda_.3} parent=23 // pred_fallthru
          _
      $region24: #{_lambda_.3} parent=5 // pred_fallthru
        _
      %p172 = scmp.le.s32.totalorder 1, %s12
      %p173 = scmp.lt.s32.totalorder %s12, 3
      %p174 = pnand %p172, %p173
      %p175 = pneg %p174
      // Predicated region
      $region29: #{_lambda_.3} parent=5 // pred_check
        _
      $region30: #{_lambda_.3} parent=5 // pred_check_branch
        %177 = sbr.rel (%p174) target = $region32
      $region31: #{_lambda_.3} parent=5 // pred_region
        %s178 = ssub.s32 %s12, 1
        %s179 = smul.u32 32, %s21
        %p180 = scmp.lt.s32.totalorder %s179, 63
        %s181 = scalar_select %p180, %s179, 63
        %s182 = smul.addr %s181, 3
        %s183 = smul.addr %s182, 4
        %s184 = scalar_lea.vmem %s0, %s183
        %p185 = pneg %p50
        %p186 = pneg %p47
        %p187 = scmp.lt.s32.totalorder %s22, 0
        %s188 = scalar_select %p187, %s22, 0
        %s189 = smul.addr %s188, 4
        %s190 = scalar_lea.vmem %s1, %s189
        %p191 = pneg %p76
        %p192 = pneg %p73
        %p193 = scmp.lt.s32.totalorder %s22, 0
        %s194 = scalar_select %p193, %s22, 0
        %s195 = scalar_lea.vmem %s2, %s194
        %p196 = pneg %p102
        %p197 = pneg %p99
        %p198 = pneg %p130
        %p199 = pneg %p127
        %s200 = sand.u32 %s117, 1
        %s201 = scalar_lea.sflag [#allocation3], %s200
        %s202 = sand.u32 %s117, 1
        %s203 = smul.addr %s202, 256
        %s204 = scalar_lea.vmem [#allocation2], %s203
        %s205 = smul.u32 32, %s21
        %p206 = scmp.lt.s32.totalorder %s205, 63
        %s207 = scalar_select %p206, %s205, 63
        %s208 = smul.addr %s207, 3
        %s209 = smul.addr %s208, 4
        %s210 = scalar_lea.vmem %s0, %s209
        %s211 = smul.u32 32, %s21
        %p212 = scmp.lt.s32.totalorder %s22, 0
        %s213 = scalar_select %p212, %s22, 0
        %s214 = smul.addr %s213, 4
        %s215 = scalar_lea.vmem %s1, %s214
        %p216 = scmp.lt.s32.totalorder %s22, 0
        %s217 = scalar_select %p216, %s22, 0
        %s218 = scalar_lea.vmem %s2, %s217
        %s219 = smul.u32 32, %s21
        %v221 = vld [vmem:[%s210] sm:$0xff]
        %v222 = vld [vmem:[%s210 + $0x8] sm:$0xf]
        %v223 = vld [vmem:[%s210 + $0xc] sm:$0xff]
        %v224 = vld [vmem:[%s210 + $0x14] sm:$0xf]
        %v225 = vld [vmem:[%s210 + $0x18] sm:$0xff]
        %v226 = vld [vmem:[%s210 + $0x20] sm:$0xf]
        %v227 = vld [vmem:[%s210 + $0x24] sm:$0xff]
        %v228 = vld [vmem:[%s210 + $0x2c] sm:$0xf]
        %v229 = vld [vmem:[%s210 + $0x30] sm:$0xff]
        %v230 = vld [vmem:[%s210 + $0x38] sm:$0xf]
        %v231 = vld [vmem:[%s210 + $0x3c] sm:$0xff]
        %v232 = vld [vmem:[%s210 + $0x44] sm:$0xf]
        %v233 = vld [vmem:[%s210 + $0x48] sm:$0xff]
        %v234 = vld [vmem:[%s210 + $0x50] sm:$0xf]
        %v235 = vld [vmem:[%s210 + $0x54] sm:$0xff]
        %v236 = vld [vmem:[%s210 + $0x5c] sm:$0xf]
        %v237 = vld [vmem:[%s210 + $0x60] sm:$0xff]
        %v238 = vld [vmem:[%s210 + $0x68] sm:$0xf]
        %v239 = vld [vmem:[%s210 + $0x6c] sm:$0xff]
        %v240 = vld [vmem:[%s210 + $0x74] sm:$0xf]
        %v241 = vld [vmem:[%s210 + $0x78] sm:$0xff]
        %v242 = vld [vmem:[%s210 + $0x80] sm:$0xf]
        %v243 = vld [vmem:[%s210 + $0x84] sm:$0xff]
        %v244 = vld [vmem:[%s210 + $0x8c] sm:$0xf]
        %v245 = vld [vmem:[%s210 + $0x90] sm:$0xff]
        %v246 = vld [vmem:[%s210 + $0x98] sm:$0xf]
        %v247 = vld [vmem:[%s210 + $0x9c] sm:$0xff]
        %v248 = vld [vmem:[%s210 + $0xa4] sm:$0xf]
        %v249 = vld [vmem:[%s210 + $0xa8] sm:$0xff]
        %v250 = vld [vmem:[%s210 + $0xb0] sm:$0xf]
        %v251 = vld [vmem:[%s210 + $0xb4] sm:$0xff]
        %v252 = vld [vmem:[%s210 + $0xbc] sm:$0xf]
        %v253 = vld [vmem:[%s210 + $0xc0] sm:$0xff]
        %v254 = vld [vmem:[%s210 + $0xc8] sm:$0xf]
        %v255 = vld [vmem:[%s210 + $0xcc] sm:$0xff]
        %v256 = vld [vmem:[%s210 + $0xd4] sm:$0xf]
        %v257 = vld [vmem:[%s210 + $0xd8] sm:$0xff]
        %v258 = vld [vmem:[%s210 + $0xe0] sm:$0xf]
        %v259 = vld [vmem:[%s210 + $0xe4] sm:$0xff]
        %v260 = vld [vmem:[%s210 + $0xec] sm:$0xf]
        %v261 = vld [vmem:[%s210 + $0xf0] sm:$0xff]
        %v262 = vld [vmem:[%s210 + $0xf8] sm:$0xf]
        %v263 = vld [vmem:[%s210 + $0xfc] sm:$0xff]
        %v264 = vld [vmem:[%s210 + $0x104] sm:$0xf]
        %v265 = vld [vmem:[%s210 + $0x108] sm:$0xff]
        %v266 = vld [vmem:[%s210 + $0x110] sm:$0xf]
        %v267 = vld [vmem:[%s210 + $0x114] sm:$0xff]
        %v268 = vld [vmem:[%s210 + $0x11c] sm:$0xf]
        %v269 = vld [vmem:[%s210 + $0x120] sm:$0xff]
        %v270 = vld [vmem:[%s210 + $0x128] sm:$0xf]
        %v271 = vld [vmem:[%s210 + $0x12c] sm:$0xff]
        %v272 = vld [vmem:[%s210 + $0x134] sm:$0xf]
        %v273 = vld [vmem:[%s210 + $0x138] sm:$0xff]
        %v274 = vld [vmem:[%s210 + $0x140] sm:$0xf]
        %v275 = vld [vmem:[%s210 + $0x144] sm:$0xff]
        %v276 = vld [vmem:[%s210 + $0x14c] sm:$0xf]
        %v277 = vld [vmem:[%s210 + $0x150] sm:$0xff]
        %v278 = vld [vmem:[%s210 + $0x158] sm:$0xf]
        %v279 = vld [vmem:[%s210 + $0x15c] sm:$0xff]
        %v280 = vld [vmem:[%s210 + $0x164] sm:$0xf]
        %v281 = vld [vmem:[%s210 + $0x168] sm:$0xff]
        %v282 = vld [vmem:[%s210 + $0x170] sm:$0xf]
        %v283 = vld [vmem:[%s210 + $0x174] sm:$0xff]
        %v284 = vld [vmem:[%s210 + $0x17c] sm:$0xf]
        %v285 = vld [vmem:[%s215] sm:$0xf]
        %v286 = vld [vmem:[%s215 + $0x4] sm:$0xf]
        %v287 = vld [vmem:[%s215 + $0x8] sm:$0xf]
        %v288 = vld [vmem:[%s215 + $0xc] sm:$0xf]
        %v289 = vld [vmem:[%s215 + $0x10] sm:$0xf]
        %v290 = vld [vmem:[%s215 + $0x14] sm:$0xf]
        %v291 = vld [vmem:[%s215 + $0x18] sm:$0xf]
        %v292 = vld [vmem:[%s215 + $0x1c] sm:$0xf]
        %v293 = vld [vmem:[%s215 + $0x20] sm:$0xf]
        %v294 = vld [vmem:[%s215 + $0x24] sm:$0xf]
        %v295 = vld [vmem:[%s215 + $0x28] sm:$0xf]
        %v296 = vld [vmem:[%s215 + $0x2c] sm:$0xf]
        %v297 = vld [vmem:[%s215 + $0x30] sm:$0xf]
        %v298 = vld [vmem:[%s215 + $0x34] sm:$0xf]
        %v299 = vld [vmem:[%s215 + $0x38] sm:$0xf]
        %v300 = vld [vmem:[%s215 + $0x3c] sm:$0xf]
        %v301 = vld [vmem:[%s215 + $0x40] sm:$0xf]
        %v302 = vld [vmem:[%s215 + $0x44] sm:$0xf]
        %v303 = vld [vmem:[%s215 + $0x48] sm:$0xf]
        %v304 = vld [vmem:[%s215 + $0x4c] sm:$0xf]
        %v305 = vld [vmem:[%s215 + $0x50] sm:$0xf]
        %v306 = vld [vmem:[%s215 + $0x54] sm:$0xf]
        %v307 = vld [vmem:[%s215 + $0x58] sm:$0xf]
        %v308 = vld [vmem:[%s215 + $0x5c] sm:$0xf]
        %v309 = vld [vmem:[%s215 + $0x60] sm:$0xf]
        %v310 = vld [vmem:[%s215 + $0x64] sm:$0xf]
        %v311 = vld [vmem:[%s215 + $0x68] sm:$0xf]
        %v312 = vld [vmem:[%s215 + $0x6c] sm:$0xf]
        %v313 = vld [vmem:[%s215 + $0x70] sm:$0xf]
        %v314 = vld [vmem:[%s215 + $0x74] sm:$0xf]
        %v315 = vld [vmem:[%s215 + $0x78] sm:$0xf]
        %v316 = vld [vmem:[%s215 + $0x7c] sm:$0xf]
        %v317 = vld [vmem:[%s215 + $0x80] sm:$0xf]
        %v318 = vld [vmem:[%s215 + $0x84] sm:$0xf]
        %v319 = vld [vmem:[%s215 + $0x88] sm:$0xf]
        %v320 = vld [vmem:[%s215 + $0x8c] sm:$0xf]
        %v321 = vld [vmem:[%s215 + $0x90] sm:$0xf]
        %v322 = vld [vmem:[%s215 + $0x94] sm:$0xf]
        %v323 = vld [vmem:[%s215 + $0x98] sm:$0xf]
        %v324 = vld [vmem:[%s215 + $0x9c] sm:$0xf]
        %v325 = vld [vmem:[%s215 + $0xa0] sm:$0xf]
        %v326 = vld [vmem:[%s215 + $0xa4] sm:$0xf]
        %v327 = vld [vmem:[%s215 + $0xa8] sm:$0xf]
        %v328 = vld [vmem:[%s215 + $0xac] sm:$0xf]
        %v329 = vld [vmem:[%s215 + $0xb0] sm:$0xf]
        %v330 = vld [vmem:[%s215 + $0xb4] sm:$0xf]
        %v331 = vld [vmem:[%s215 + $0xb8] sm:$0xf]
        %v332 = vld [vmem:[%s215 + $0xbc] sm:$0xf]
        %v333 = vld [vmem:[%s218] sm:$0x1]
        %v335 = vlaneseq
        %v336 = vshrl.u32 %v335, 7
        %v337 = vsub.s32 0, %v336
        %v338 = vrot.slane %v333, %v337
        %v404 = vunpack.c.l.b16 %v221
        %v405 = vunpack.c.h.b16 %v221
        %v406 = vunpack.c.l.b16 %v222
        %v407 = vunpack.c.l.b16 %v223
        %v408 = vunpack.c.h.b16 %v223
        %v409 = vunpack.c.l.b16 %v224
        %v410 = vunpack.c.l.b16 %v225
        %v411 = vunpack.c.h.b16 %v225
        %v412 = vunpack.c.l.b16 %v226
        %v413 = vunpack.c.l.b16 %v227
        %v414 = vunpack.c.h.b16 %v227
        %v415 = vunpack.c.l.b16 %v228
        %v416 = vunpack.c.l.b16 %v229
        %v417 = vunpack.c.h.b16 %v229
        %v418 = vunpack.c.l.b16 %v230
        %v419 = vunpack.c.l.b16 %v231
        %v420 = vunpack.c.h.b16 %v231
        %v421 = vunpack.c.l.b16 %v232
        %v422 = vunpack.c.l.b16 %v233
        %v423 = vunpack.c.h.b16 %v233
        %v424 = vunpack.c.l.b16 %v234
        %v425 = vunpack.c.l.b16 %v235
        %v426 = vunpack.c.h.b16 %v235
        %v427 = vunpack.c.l.b16 %v236
        %v428 = vunpack.c.l.b16 %v237
        %v429 = vunpack.c.h.b16 %v237
        %v430 = vunpack.c.l.b16 %v238
        %v431 = vunpack.c.l.b16 %v239
        %v432 = vunpack.c.h.b16 %v239
        %v433 = vunpack.c.l.b16 %v240
        %v434 = vunpack.c.l.b16 %v241
        %v435 = vunpack.c.h.b16 %v241
        %v436 = vunpack.c.l.b16 %v242
        %v437 = vunpack.c.l.b16 %v243
        %v438 = vunpack.c.h.b16 %v243
        %v439 = vunpack.c.l.b16 %v244
        %v440 = vunpack.c.l.b16 %v245
        %v441 = vunpack.c.h.b16 %v245
        %v442 = vunpack.c.l.b16 %v246
        %v443 = vunpack.c.l.b16 %v247
        %v444 = vunpack.c.h.b16 %v247
        %v445 = vunpack.c.l.b16 %v248
        %v446 = vunpack.c.l.b16 %v249
        %v447 = vunpack.c.h.b16 %v249
        %v448 = vunpack.c.l.b16 %v250
        %v449 = vunpack.c.l.b16 %v251
        %v450 = vunpack.c.h.b16 %v251
        %v451 = vunpack.c.l.b16 %v252
        %v452 = vunpack.c.l.b16 %v253
        %v453 = vunpack.c.h.b16 %v253
        %v454 = vunpack.c.l.b16 %v254
        %v455 = vunpack.c.l.b16 %v255
        %v456 = vunpack.c.h.b16 %v255
        %v457 = vunpack.c.l.b16 %v256
        %v458 = vunpack.c.l.b16 %v257
        %v459 = vunpack.c.h.b16 %v257
        %v460 = vunpack.c.l.b16 %v258
        %v461 = vunpack.c.l.b16 %v259
        %v462 = vunpack.c.h.b16 %v259
        %v463 = vunpack.c.l.b16 %v260
        %v464 = vunpack.c.l.b16 %v261
        %v465 = vunpack.c.h.b16 %v261
        %v466 = vunpack.c.l.b16 %v262
        %v467 = vunpack.c.l.b16 %v263
        %v468 = vunpack.c.h.b16 %v263
        %v469 = vunpack.c.l.b16 %v264
        %v470 = vunpack.c.l.b16 %v265
        %v471 = vunpack.c.h.b16 %v265
        %v472 = vunpack.c.l.b16 %v266
        %v473 = vunpack.c.l.b16 %v267
        %v474 = vunpack.c.h.b16 %v267
        %v475 = vunpack.c.l.b16 %v268
        %v476 = vunpack.c.l.b16 %v269
        %v477 = vunpack.c.h.b16 %v269
        %v478 = vunpack.c.l.b16 %v270
        %v479 = vunpack.c.l.b16 %v271
        %v480 = vunpack.c.h.b16 %v271
        %v481 = vunpack.c.l.b16 %v272
        %v482 = vunpack.c.l.b16 %v273
        %v483 = vunpack.c.h.b16 %v273
        %v484 = vunpack.c.l.b16 %v274
        %v485 = vunpack.c.l.b16 %v275
        %v486 = vunpack.c.h.b16 %v275
        %v487 = vunpack.c.l.b16 %v276
        %v488 = vunpack.c.l.b16 %v277
        %v489 = vunpack.c.h.b16 %v277
        %v490 = vunpack.c.l.b16 %v278
        %v491 = vunpack.c.l.b16 %v279
        %v492 = vunpack.c.h.b16 %v279
        %v493 = vunpack.c.l.b16 %v280
        %v494 = vunpack.c.l.b16 %v281
        %v495 = vunpack.c.h.b16 %v281
        %v496 = vunpack.c.l.b16 %v282
        %v497 = vunpack.c.l.b16 %v283
        %v498 = vunpack.c.h.b16 %v283
        %v499 = vunpack.c.l.b16 %v284
        %v500 = vpack.c.b16 %v407, %v404
        %v501 = vpack.c.b16 %v408, %v405
        %v502 = vpack.c.b16 %v409, %v406
        %v503 = vpack.c.b16 %v413, %v410
        %v504 = vpack.c.b16 %v414, %v411
        %v505 = vpack.c.b16 %v415, %v412
        %v506 = vpack.c.b16 %v419, %v416
        %v507 = vpack.c.b16 %v420, %v417
        %v508 = vpack.c.b16 %v421, %v418
        %v509 = vpack.c.b16 %v425, %v422
        %v510 = vpack.c.b16 %v426, %v423
        %v511 = vpack.c.b16 %v427, %v424
        %v512 = vpack.c.b16 %v431, %v428
        %v513 = vpack.c.b16 %v432, %v429
        %v514 = vpack.c.b16 %v433, %v430
        %v515 = vpack.c.b16 %v437, %v434
        %v516 = vpack.c.b16 %v438, %v435
        %v517 = vpack.c.b16 %v439, %v436
        %v518 = vpack.c.b16 %v443, %v440
        %v519 = vpack.c.b16 %v444, %v441
        %v520 = vpack.c.b16 %v445, %v442
        %v521 = vpack.c.b16 %v449, %v446
        %v522 = vpack.c.b16 %v450, %v447
        %v523 = vpack.c.b16 %v451, %v448
        %v524 = vpack.c.b16 %v455, %v452
        %v525 = vpack.c.b16 %v456, %v453
        %v526 = vpack.c.b16 %v457, %v454
        %v527 = vpack.c.b16 %v461, %v458
        %v528 = vpack.c.b16 %v462, %v459
        %v529 = vpack.c.b16 %v463, %v460
        %v530 = vpack.c.b16 %v467, %v464
        %v531 = vpack.c.b16 %v468, %v465
        %v532 = vpack.c.b16 %v469, %v466
        %v533 = vpack.c.b16 %v473, %v470
        %v534 = vpack.c.b16 %v474, %v471
        %v535 = vpack.c.b16 %v475, %v472
        %v536 = vpack.c.b16 %v479, %v476
        %v537 = vpack.c.b16 %v480, %v477
        %v538 = vpack.c.b16 %v481, %v478
        %v539 = vpack.c.b16 %v485, %v482
        %v540 = vpack.c.b16 %v486, %v483
        %v541 = vpack.c.b16 %v487, %v484
        %v542 = vpack.c.b16 %v491, %v488
        %v543 = vpack.c.b16 %v492, %v489
        %v544 = vpack.c.b16 %v493, %v490
        %v545 = vpack.c.b16 %v497, %v494
        %v546 = vpack.c.b16 %v498, %v495
        %v547 = vpack.c.b16 %v499, %v496
        %v644 = vunpack.c.l.b16 %v285
        %v645 = vunpack.c.l.b16 %v286
        %v646 = vunpack.c.l.b16 %v287
        %v647 = vunpack.c.l.b16 %v288
        %v648 = vunpack.c.l.b16 %v289
        %v649 = vunpack.c.l.b16 %v290
        %v650 = vunpack.c.l.b16 %v291
        %v651 = vunpack.c.l.b16 %v292
        %v652 = vunpack.c.l.b16 %v293
        %v653 = vunpack.c.l.b16 %v294
        %v654 = vunpack.c.l.b16 %v295
        %v655 = vunpack.c.l.b16 %v296
        %v656 = vunpack.c.l.b16 %v297
        %v657 = vunpack.c.l.b16 %v298
        %v658 = vunpack.c.l.b16 %v299
        %v659 = vunpack.c.l.b16 %v300
        %v660 = vunpack.c.l.b16 %v301
        %v661 = vunpack.c.l.b16 %v302
        %v662 = vunpack.c.l.b16 %v303
        %v663 = vunpack.c.l.b16 %v304
        %v664 = vunpack.c.l.b16 %v305
        %v665 = vunpack.c.l.b16 %v306
        %v666 = vunpack.c.l.b16 %v307
        %v667 = vunpack.c.l.b16 %v308
        %v668 = vunpack.c.l.b16 %v309
        %v669 = vunpack.c.l.b16 %v310
        %v670 = vunpack.c.l.b16 %v311
        %v671 = vunpack.c.l.b16 %v312
        %v672 = vunpack.c.l.b16 %v313
        %v673 = vunpack.c.l.b16 %v314
        %v674 = vunpack.c.l.b16 %v315
        %v675 = vunpack.c.l.b16 %v316
        %v676 = vunpack.c.l.b16 %v317
        %v677 = vunpack.c.l.b16 %v318
        %v678 = vunpack.c.l.b16 %v319
        %v679 = vunpack.c.l.b16 %v320
        %v680 = vunpack.c.l.b16 %v321
        %v681 = vunpack.c.l.b16 %v322
        %v682 = vunpack.c.l.b16 %v323
        %v683 = vunpack.c.l.b16 %v324
        %v684 = vunpack.c.l.b16 %v325
        %v685 = vunpack.c.l.b16 %v326
        %v686 = vunpack.c.l.b16 %v327
        %v687 = vunpack.c.l.b16 %v328
        %v688 = vunpack.c.l.b16 %v329
        %v689 = vunpack.c.l.b16 %v330
        %v690 = vunpack.c.l.b16 %v331
        %v691 = vunpack.c.l.b16 %v332
        %v692 = vpack.c.b16 %v645, %v644
        %v693 = vpack.c.b16 %v647, %v646
        %v694 = vpack.c.b16 %v649, %v648
        %v695 = vpack.c.b16 %v651, %v650
        %v696 = vpack.c.b16 %v653, %v652
        %v697 = vpack.c.b16 %v655, %v654
        %v698 = vpack.c.b16 %v657, %v656
        %v699 = vpack.c.b16 %v659, %v658
        %v700 = vpack.c.b16 %v661, %v660
        %v701 = vpack.c.b16 %v663, %v662
        %v702 = vpack.c.b16 %v665, %v664
        %v703 = vpack.c.b16 %v667, %v666
        %v704 = vpack.c.b16 %v669, %v668
        %v705 = vpack.c.b16 %v671, %v670
        %v706 = vpack.c.b16 %v673, %v672
        %v707 = vpack.c.b16 %v675, %v674
        %v708 = vpack.c.b16 %v677, %v676
        %v709 = vpack.c.b16 %v679, %v678
        %v710 = vpack.c.b16 %v681, %v680
        %v711 = vpack.c.b16 %v683, %v682
        %v712 = vpack.c.b16 %v685, %v684
        %v713 = vpack.c.b16 %v687, %v686
        %v714 = vpack.c.b16 %v689, %v688
        %v715 = vpack.c.b16 %v691, %v690
        %740 = vmatprep.subr.bf16.mxu0 0
        %741 = vmatpush1.bf16.msra.mxu0 %v699
        %742 = vmatprep.subr.bf16.mxu0 0
        %743 = vmatpush1.bf16.msra.mxu0 %v698
        %744 = vmatprep.subr.bf16.mxu0 0
        %745 = vmatpush1.bf16.msra.mxu0 %v697
        %746 = vmatprep.subr.bf16.mxu0 0
        %747 = vmatpush1.bf16.msra.mxu0 %v696
        %748 = vmatprep.subr.bf16.mxu0 0
        %749 = vmatpush1.bf16.msra.mxu0 %v695
        %750 = vmatprep.subr.bf16.mxu0 0
        %751 = vmatpush1.bf16.msra.mxu0 %v694
        %752 = vmatprep.subr.bf16.mxu0 0
        %753 = vmatpush1.bf16.msra.mxu0 %v693
        %754 = vmatprep.subr.bf16.mxu0 0
        %755 = vmatpush1.bf16.msra.mxu0 %v692
        %756 = vmatprep.subr.bf16.mxu0 0
        %757 = vmatpush2.bf16.msra.mxu0 %v707
        %758 = vmatprep.subr.bf16.mxu0 0
        %759 = vmatpush2.bf16.msra.mxu0 %v706
        %760 = vmatprep.subr.bf16.mxu0 0
        %761 = vmatpush2.bf16.msra.mxu0 %v705
        %762 = vmatprep.subr.bf16.mxu0 0
        %763 = vmatpush2.bf16.msra.mxu0 %v704
        %764 = vmatprep.subr.bf16.mxu0 0
        %765 = vmatpush2.bf16.msra.mxu0 %v703
        %766 = vmatprep.subr.bf16.mxu0 0
        %767 = vmatpush2.bf16.msra.mxu0 %v702
        %768 = vmatprep.subr.bf16.mxu0 0
        %769 = vmatpush2.bf16.msra.mxu0 %v701
        %770 = vmatprep.subr.bf16.mxu0 0
        %771 = vmatpush2.bf16.msra.mxu0 %v700
        %772 = vmatprep.mubr.bf16.mxu0 %v501
        %773 = vmatmul.mubr.bf16.gmra.mxu0 %v500
        %v774 = vpop.f32.mrf.mxu0
        %v775 = vadd.f32 %v338, %v774
        %v776 = vpop.f32.mrf.mxu0
        %v777 = vpop.f32.mrf.mxu0
        %v778 = vadd.f32 %v338, %v777
        %v779 = vpop.f32.mrf.mxu0
        %780 = vmatprep.mubr.bf16.mxu0 %v504
        %781 = vmatmul.mubr.bf16.gmra.mxu0 %v503
        %v782 = vpop.f32.mrf.mxu0
        %v783 = vadd.f32 %v338, %v782
        %v784 = vpop.f32.mrf.mxu0
        %v785 = vpop.f32.mrf.mxu0
        %v786 = vadd.f32 %v338, %v785
        %v787 = vpop.f32.mrf.mxu0
        %788 = vmatprep.mubr.bf16.mxu0 %v507
        %789 = vmatmul.mubr.bf16.gmra.mxu0 %v506
        %v790 = vpop.f32.mrf.mxu0
        %v791 = vadd.f32 %v338, %v790
        %v792 = vpop.f32.mrf.mxu0
        %v793 = vpop.f32.mrf.mxu0
        %v794 = vadd.f32 %v338, %v793
        %v795 = vpop.f32.mrf.mxu0
        %796 = vmatprep.mubr.bf16.mxu0 %v510
        %797 = vmatmul.mubr.bf16.gmra.mxu0 %v509
        %v798 = vpop.f32.mrf.mxu0
        %v799 = vadd.f32 %v338, %v798
        %v800 = vpop.f32.mrf.mxu0
        %v801 = vpop.f32.mrf.mxu0
        %v802 = vadd.f32 %v338, %v801
        %v803 = vpop.f32.mrf.mxu0
        %804 = vmatprep.mubr.bf16.mxu0 %v513
        %805 = vmatmul.mubr.bf16.gmra.mxu0 %v512
        %v806 = vpop.f32.mrf.mxu0
        %v807 = vadd.f32 %v338, %v806
        %v808 = vpop.f32.mrf.mxu0
        %v809 = vpop.f32.mrf.mxu0
        %v810 = vadd.f32 %v338, %v809
        %v811 = vpop.f32.mrf.mxu0
        %812 = vmatprep.mubr.bf16.mxu0 %v516
        %813 = vmatmul.mubr.bf16.gmra.mxu0 %v515
        %v814 = vpop.f32.mrf.mxu0
        %v815 = vadd.f32 %v338, %v814
        %v816 = vpop.f32.mrf.mxu0
        %v817 = vpop.f32.mrf.mxu0
        %v818 = vadd.f32 %v338, %v817
        %v819 = vpop.f32.mrf.mxu0
        %820 = vmatprep.mubr.bf16.mxu0 %v519
        %821 = vmatmul.mubr.bf16.gmra.mxu0 %v518
        %v822 = vpop.f32.mrf.mxu0
        %v823 = vadd.f32 %v338, %v822
        %v824 = vpop.f32.mrf.mxu0
        %v825 = vpop.f32.mrf.mxu0
        %v826 = vadd.f32 %v338, %v825
        %v827 = vpop.f32.mrf.mxu0
        %828 = vmatprep.mubr.bf16.mxu0 %v522
        %829 = vmatmul.mubr.bf16.gmra.mxu0 %v521
        %v830 = vpop.f32.mrf.mxu0
        %v831 = vadd.f32 %v338, %v830
        %v832 = vpop.f32.mrf.mxu0
        %v833 = vpop.f32.mrf.mxu0
        %v834 = vadd.f32 %v338, %v833
        %v835 = vpop.f32.mrf.mxu0
        %836 = vmatprep.mubr.bf16.mxu0 %v525
        %837 = vmatmul.mubr.bf16.gmra.mxu0 %v524
        %v838 = vpop.f32.mrf.mxu0
        %v839 = vadd.f32 %v338, %v838
        %v840 = vpop.f32.mrf.mxu0
        %v841 = vpop.f32.mrf.mxu0
        %v842 = vadd.f32 %v338, %v841
        %v843 = vpop.f32.mrf.mxu0
        %844 = vmatprep.mubr.bf16.mxu0 %v528
        %845 = vmatmul.mubr.bf16.gmra.mxu0 %v527
        %v846 = vpop.f32.mrf.mxu0
        %v847 = vadd.f32 %v338, %v846
        %v848 = vpop.f32.mrf.mxu0
        %v849 = vpop.f32.mrf.mxu0
        %v850 = vadd.f32 %v338, %v849
        %v851 = vpop.f32.mrf.mxu0
        %852 = vmatprep.mubr.bf16.mxu0 %v531
        %853 = vmatmul.mubr.bf16.gmra.mxu0 %v530
        %v854 = vpop.f32.mrf.mxu0
        %v855 = vadd.f32 %v338, %v854
        %v856 = vpop.f32.mrf.mxu0
        %v857 = vpop.f32.mrf.mxu0
        %v858 = vadd.f32 %v338, %v857
        %v859 = vpop.f32.mrf.mxu0
        %860 = vmatprep.mubr.bf16.mxu0 %v534
        %861 = vmatmul.mubr.bf16.gmra.mxu0 %v533
        %v862 = vpop.f32.mrf.mxu0
        %v863 = vadd.f32 %v338, %v862
        %v864 = vpop.f32.mrf.mxu0
        %v865 = vpop.f32.mrf.mxu0
        %v866 = vadd.f32 %v338, %v865
        %v867 = vpop.f32.mrf.mxu0
        %868 = vmatprep.mubr.bf16.mxu0 %v537
        %869 = vmatmul.mubr.bf16.gmra.mxu0 %v536
        %v870 = vpop.f32.mrf.mxu0
        %v871 = vadd.f32 %v338, %v870
        %v872 = vpop.f32.mrf.mxu0
        %v873 = vpop.f32.mrf.mxu0
        %v874 = vadd.f32 %v338, %v873
        %v875 = vpop.f32.mrf.mxu0
        %876 = vmatprep.mubr.bf16.mxu0 %v540
        %877 = vmatmul.mubr.bf16.gmra.mxu0 %v539
        %v878 = vpop.f32.mrf.mxu0
        %v879 = vadd.f32 %v338, %v878
        %v880 = vpop.f32.mrf.mxu0
        %v881 = vpop.f32.mrf.mxu0
        %v882 = vadd.f32 %v338, %v881
        %v883 = vpop.f32.mrf.mxu0
        %884 = vmatprep.mubr.bf16.mxu0 %v543
        %885 = vmatmul.mubr.bf16.gmra.mxu0 %v542
        %v886 = vpop.f32.mrf.mxu0
        %v887 = vadd.f32 %v338, %v886
        %v888 = vpop.f32.mrf.mxu0
        %v889 = vpop.f32.mrf.mxu0
        %v890 = vadd.f32 %v338, %v889
        %v891 = vpop.f32.mrf.mxu0
        %892 = vmatprep.mubr.bf16.mxu0 %v546
        %893 = vmatmul.mubr.bf16.gmra.mxu0 %v545
        %v894 = vpop.f32.mrf.mxu0
        %v895 = vadd.f32 %v338, %v894
        %v896 = vpop.f32.mrf.mxu0
        %v897 = vpop.f32.mrf.mxu0
        %v898 = vadd.f32 %v338, %v897
        %v899 = vpop.f32.mrf.mxu0
        %900 = vdwg.mxu0
        %901 = vmatprep.subr.bf16.mxu0 0
        %902 = vmatpush1.bf16.msra.mxu0 %v715
        %903 = vmatprep.subr.bf16.mxu0 0
        %904 = vmatpush1.bf16.msra.mxu0 %v714
        %905 = vmatprep.subr.bf16.mxu0 0
        %906 = vmatpush1.bf16.msra.mxu0 %v713
        %907 = vmatprep.subr.bf16.mxu0 0
        %908 = vmatpush1.bf16.msra.mxu0 %v712
        %909 = vmatprep.subr.bf16.mxu0 0
        %910 = vmatpush1.bf16.msra.mxu0 %v711
        %911 = vmatprep.subr.bf16.mxu0 0
        %912 = vmatpush1.bf16.msra.mxu0 %v710
        %913 = vmatprep.subr.bf16.mxu0 0
        %914 = vmatpush1.bf16.msra.mxu0 %v709
        %915 = vmatprep.subr.bf16.mxu0 0
        %916 = vmatpush1.bf16.msra.mxu0 %v708
        %917 = vmatprep.subr.bf16.mxu0 0
        %918 = vmatpush2.bf16.msra.mxu0 0
        %919 = vmatprep.subr.bf16.mxu0 0
        %920 = vmatpush2.bf16.msra.mxu0 0
        %921 = vmatprep.subr.bf16.mxu0 0
        %922 = vmatpush2.bf16.msra.mxu0 0
        %923 = vmatprep.subr.bf16.mxu0 0
        %924 = vmatpush2.bf16.msra.mxu0 0
        %925 = vmatprep.subr.bf16.mxu0 0
        %926 = vmatpush2.bf16.msra.mxu0 0
        %927 = vmatprep.subr.bf16.mxu0 0
        %928 = vmatpush2.bf16.msra.mxu0 0
        %929 = vmatprep.subr.bf16.mxu0 0
        %930 = vmatpush2.bf16.msra.mxu0 0
        %931 = vmatprep.subr.bf16.mxu0 0
        %932 = vmatpush2.bf16.msra.mxu0 0
        %933 = vmatprep.mubr.bf16.mxu0 0
        %934 = vmatmul.mubr.bf16.gmra.mxu0 %v502
        %v935 = vpop.f32.mrf.mxu0
        %v936 = vadd.f32 %v775, %v935
        %v937 = vpop.f32.mrf.mxu0
        %v938 = vpop.f32.mrf.mxu0
        %v939 = vadd.f32 %v778, %v938
        %v940 = vpop.f32.mrf.mxu0
        %941 = vmatprep.mubr.bf16.mxu0 0
        %942 = vmatmul.mubr.bf16.gmra.mxu0 %v505
        %v943 = vpop.f32.mrf.mxu0
        %v944 = vadd.f32 %v783, %v943
        %v945 = vpop.f32.mrf.mxu0
        %v946 = vpop.f32.mrf.mxu0
        %v947 = vadd.f32 %v786, %v946
        %v948 = vpop.f32.mrf.mxu0
        %949 = vmatprep.mubr.bf16.mxu0 0
        %950 = vmatmul.mubr.bf16.gmra.mxu0 %v508
        %v951 = vpop.f32.mrf.mxu0
        %v952 = vadd.f32 %v791, %v951
        %v953 = vpop.f32.mrf.mxu0
        %v954 = vpop.f32.mrf.mxu0
        %v955 = vadd.f32 %v794, %v954
        %v956 = vpop.f32.mrf.mxu0
        %957 = vmatprep.mubr.bf16.mxu0 0
        %958 = vmatmul.mubr.bf16.gmra.mxu0 %v511
        %v959 = vpop.f32.mrf.mxu0
        %v960 = vadd.f32 %v799, %v959
        %v961 = vpop.f32.mrf.mxu0
        %v962 = vpop.f32.mrf.mxu0
        %v963 = vadd.f32 %v802, %v962
        %v964 = vpop.f32.mrf.mxu0
        %965 = vmatprep.mubr.bf16.mxu0 0
        %966 = vmatmul.mubr.bf16.gmra.mxu0 %v514
        %v967 = vpop.f32.mrf.mxu0
        %v968 = vadd.f32 %v807, %v967
        %v969 = vpop.f32.mrf.mxu0
        %v970 = vpop.f32.mrf.mxu0
        %v971 = vadd.f32 %v810, %v970
        %v972 = vpop.f32.mrf.mxu0
        %973 = vmatprep.mubr.bf16.mxu0 0
        %974 = vmatmul.mubr.bf16.gmra.mxu0 %v517
        %v975 = vpop.f32.mrf.mxu0
        %v976 = vadd.f32 %v815, %v975
        %v977 = vpop.f32.mrf.mxu0
        %v978 = vpop.f32.mrf.mxu0
        %v979 = vadd.f32 %v818, %v978
        %v980 = vpop.f32.mrf.mxu0
        %981 = vmatprep.mubr.bf16.mxu0 0
        %982 = vmatmul.mubr.bf16.gmra.mxu0 %v520
        %v983 = vpop.f32.mrf.mxu0
        %v984 = vadd.f32 %v823, %v983
        %v985 = vpop.f32.mrf.mxu0
        %v986 = vpop.f32.mrf.mxu0
        %v987 = vadd.f32 %v826, %v986
        %v988 = vpop.f32.mrf.mxu0
        %989 = vmatprep.mubr.bf16.mxu0 0
        %990 = vmatmul.mubr.bf16.gmra.mxu0 %v523
        %v991 = vpop.f32.mrf.mxu0
        %v992 = vadd.f32 %v831, %v991
        %v993 = vpop.f32.mrf.mxu0
        %v994 = vpop.f32.mrf.mxu0
        %v995 = vadd.f32 %v834, %v994
        %v996 = vpop.f32.mrf.mxu0
        %997 = vmatprep.mubr.bf16.mxu0 0
        %998 = vmatmul.mubr.bf16.gmra.mxu0 %v526
        %v999 = vpop.f32.mrf.mxu0
        %v1000 = vadd.f32 %v839, %v999
        %v1001 = vpop.f32.mrf.mxu0
        %v1002 = vpop.f32.mrf.mxu0
        %v1003 = vadd.f32 %v842, %v1002
        %v1004 = vpop.f32.mrf.mxu0
        %1005 = vmatprep.mubr.bf16.mxu0 0
        %1006 = vmatmul.mubr.bf16.gmra.mxu0 %v529
        %v1007 = vpop.f32.mrf.mxu0
        %v1008 = vadd.f32 %v847, %v1007
        %v1009 = vpop.f32.mrf.mxu0
        %v1010 = vpop.f32.mrf.mxu0
        %v1011 = vadd.f32 %v850, %v1010
        %v1012 = vpop.f32.mrf.mxu0
        %1013 = vmatprep.mubr.bf16.mxu0 0
        %1014 = vmatmul.mubr.bf16.gmra.mxu0 %v532
        %v1015 = vpop.f32.mrf.mxu0
        %v1016 = vadd.f32 %v855, %v1015
        %v1017 = vpop.f32.mrf.mxu0
        %v1018 = vpop.f32.mrf.mxu0
        %v1019 = vadd.f32 %v858, %v1018
        %v1020 = vpop.f32.mrf.mxu0
        %1021 = vmatprep.mubr.bf16.mxu0 0
        %1022 = vmatmul.mubr.bf16.gmra.mxu0 %v535
        %v1023 = vpop.f32.mrf.mxu0
        %v1024 = vadd.f32 %v863, %v1023
        %v1025 = vpop.f32.mrf.mxu0
        %v1026 = vpop.f32.mrf.mxu0
        %v1027 = vadd.f32 %v866, %v1026
        %v1028 = vpop.f32.mrf.mxu0
        %1029 = vmatprep.mubr.bf16.mxu0 0
        %1030 = vmatmul.mubr.bf16.gmra.mxu0 %v538
        %v1031 = vpop.f32.mrf.mxu0
        %v1032 = vadd.f32 %v871, %v1031
        %v1033 = vpop.f32.mrf.mxu0
        %v1034 = vpop.f32.mrf.mxu0
        %v1035 = vadd.f32 %v874, %v1034
        %v1036 = vpop.f32.mrf.mxu0
        %1037 = vmatprep.mubr.bf16.mxu0 0
        %1038 = vmatmul.mubr.bf16.gmra.mxu0 %v541
        %v1039 = vpop.f32.mrf.mxu0
        %v1040 = vadd.f32 %v879, %v1039
        %v1041 = vpop.f32.mrf.mxu0
        %v1042 = vpop.f32.mrf.mxu0
        %v1043 = vadd.f32 %v882, %v1042
        %v1044 = vpop.f32.mrf.mxu0
        %1045 = vmatprep.mubr.bf16.mxu0 0
        %1046 = vmatmul.mubr.bf16.gmra.mxu0 %v544
        %v1047 = vpop.f32.mrf.mxu0
        %v1048 = vadd.f32 %v887, %v1047
        %v1049 = vpop.f32.mrf.mxu0
        %v1050 = vpop.f32.mrf.mxu0
        %v1051 = vadd.f32 %v890, %v1050
        %v1052 = vpop.f32.mrf.mxu0
        %1053 = vmatprep.mubr.bf16.mxu0 0
        %1054 = vmatmul.mubr.bf16.gmra.mxu0 %v547
        %v1055 = vpop.f32.mrf.mxu0
        %v1056 = vadd.f32 %v895, %v1055
        %v1057 = vpop.f32.mrf.mxu0
        %v1058 = vpop.f32.mrf.mxu0
        %v1059 = vadd.f32 %v898, %v1058
        %v1060 = vpop.f32.mrf.mxu0
        %1061 = vdwg.mxu0
        %v1062 = vmax.f32 %v936, 0.0
        %v1063 = vmax.f32 %v939, 0.0
        %v1064 = vmax.f32 %v944, 0.0
        %v1065 = vmax.f32 %v947, 0.0
        %v1066 = vmax.f32 %v952, 0.0
        %v1067 = vmax.f32 %v955, 0.0
        %v1068 = vmax.f32 %v960, 0.0
        %v1069 = vmax.f32 %v963, 0.0
        %v1070 = vmax.f32 %v968, 0.0
        %v1071 = vmax.f32 %v971, 0.0
        %v1072 = vmax.f32 %v976, 0.0
        %v1073 = vmax.f32 %v979, 0.0
        %v1074 = vmax.f32 %v984, 0.0
        %v1075 = vmax.f32 %v987, 0.0
        %v1076 = vmax.f32 %v992, 0.0
        %v1077 = vmax.f32 %v995, 0.0
        %v1078 = vmax.f32 %v1000, 0.0
        %v1079 = vmax.f32 %v1003, 0.0
        %v1080 = vmax.f32 %v1008, 0.0
        %v1081 = vmax.f32 %v1011, 0.0
        %v1082 = vmax.f32 %v1016, 0.0
        %v1083 = vmax.f32 %v1019, 0.0
        %v1084 = vmax.f32 %v1024, 0.0
        %v1085 = vmax.f32 %v1027, 0.0
        %v1086 = vmax.f32 %v1032, 0.0
        %v1087 = vmax.f32 %v1035, 0.0
        %v1088 = vmax.f32 %v1040, 0.0
        %v1089 = vmax.f32 %v1043, 0.0
        %v1090 = vmax.f32 %v1048, 0.0
        %v1091 = vmax.f32 %v1051, 0.0
        %v1092 = vmax.f32 %v1056, 0.0
        %v1093 = vmax.f32 %v1059, 0.0
        %1094 = vst [vmem:[%s204] sm:$0xff] %v1062
        %1095 = vst [vmem:[%s204 + $0x8] sm:$0xff] %v1063
        %1096 = vst [vmem:[%s204 + $0x10] sm:$0xff] %v1064
        %1097 = vst [vmem:[%s204 + $0x18] sm:$0xff] %v1065
        %1098 = vst [vmem:[%s204 + $0x20] sm:$0xff] %v1066
        %1099 = vst [vmem:[%s204 + $0x28] sm:$0xff] %v1067
        %1100 = vst [vmem:[%s204 + $0x30] sm:$0xff] %v1068
        %1101 = vst [vmem:[%s204 + $0x38] sm:$0xff] %v1069
        %1102 = vst [vmem:[%s204 + $0x40] sm:$0xff] %v1070
        %1103 = vst [vmem:[%s204 + $0x48] sm:$0xff] %v1071
        %1104 = vst [vmem:[%s204 + $0x50] sm:$0xff] %v1072
        %1105 = vst [vmem:[%s204 + $0x58] sm:$0xff] %v1073
        %1106 = vst [vmem:[%s204 + $0x60] sm:$0xff] %v1074
        %1107 = vst [vmem:[%s204 + $0x68] sm:$0xff] %v1075
        %1108 = vst [vmem:[%s204 + $0x70] sm:$0xff] %v1076
        %1109 = vst [vmem:[%s204 + $0x78] sm:$0xff] %v1077
        %1110 = vst [vmem:[%s204 + $0x80] sm:$0xff] %v1078
        %1111 = vst [vmem:[%s204 + $0x88] sm:$0xff] %v1079
        %1112 = vst [vmem:[%s204 + $0x90] sm:$0xff] %v1080
        %1113 = vst [vmem:[%s204 + $0x98] sm:$0xff] %v1081
        %1114 = vst [vmem:[%s204 + $0xa0] sm:$0xff] %v1082
        %1115 = vst [vmem:[%s204 + $0xa8] sm:$0xff] %v1083
        %1116 = vst [vmem:[%s204 + $0xb0] sm:$0xff] %v1084
        %1117 = vst [vmem:[%s204 + $0xb8] sm:$0xff] %v1085
        %1118 = vst [vmem:[%s204 + $0xc0] sm:$0xff] %v1086
        %1119 = vst [vmem:[%s204 + $0xc8] sm:$0xff] %v1087
        %1120 = vst [vmem:[%s204 + $0xd0] sm:$0xff] %v1088
        %1121 = vst [vmem:[%s204 + $0xd8] sm:$0xff] %v1089
        %1122 = vst [vmem:[%s204 + $0xe0] sm:$0xff] %v1090
        %1123 = vst [vmem:[%s204 + $0xe8] sm:$0xff] %v1091
        %1124 = vst [vmem:[%s204 + $0xf0] sm:$0xff] %v1092
        %1125 = vst [vmem:[%s204 + $0xf8] sm:$0xff] %v1093
        %s1126 = sand.u32 %s117, 1
        %s1127 = scalar_lea.sflag [#allocation3], %s1126
        %s1128 = sand.u32 %s117, 1
        %s1129 = smul.addr %s1128, 256
        %s1130 = scalar_lea.vmem [#allocation2], %s1129
        // Predicated region
        $region33: #{_lambda_.3} parent=31 // pred_check
          %p1131 = pneg %p127
        $region34: #{_lambda_.3} parent=31 // pred_check_branch
          %1133 = sbr.rel (%p1131) target = $region36
        $region35: #{_lambda_.3} parent=31 // pred_region
          %s1134 = smul.u32 32, %s21
          %s1136 = ssub.s32 4096, 4096
          %1137 = vsyncadd %s1127, %s1136
          %s1138 = sadd.s32 %s22, %s1134
          %s1139 = smul.addr %s1138, 128
          %s1140 = scalar_lea.hbm %s3, %s1139
          %s1141 = sshll.u32 %s1130, 4
          %s1142 = int_to_ptr.vmem [resolvable:$true] %s1141
          %1147 = dma.vmem_to_hbm [thread:$0]  %s1142, 4096, %s1140, %s1127, 128, 128, 8
        $region36: #{_lambda_.3} parent=31 // pred_fallthru
          _
      $region32: #{_lambda_.3} parent=5 // pred_fallthru
        _
      %p1148 = scmp.le.s32.totalorder 2, %s12
      // Predicated region
      $region37: #{_lambda_.3} parent=5 // pred_check
        %p1149 = pneg %p1148
      $region38: #{_lambda_.3} parent=5 // pred_check_branch
        %1151 = sbr.rel (%p1149) target = $region40
      $region39: #{_lambda_.3} parent=5 // pred_region
        %s1152 = ssub.s32 %s12, 2
        // Predicated region
        $region41: #{_lambda_.3} parent=39 // pred_check
          %p1153 = pneg %p133
        $region42: #{_lambda_.3} parent=39 // pred_check_branch
          %1155 = sbr.rel (%p1153) target = $region44
        $region43: #{_lambda_.3} parent=39 // pred_region
          %s1156 = sand.u32 %s118, 1
          %s1157 = scalar_lea.sflag [#allocation3], %s1156
          %s1158 = sand.u32 %s118, 1
          %s1159 = smul.addr %s1158, 256
          %s1160 = scalar_lea.vmem [#allocation2], %s1159
          %1161 = dma.done %s1157, 4096
        $region44: #{_lambda_.3} parent=39 // pred_fallthru
          _
      $region40: #{_lambda_.3} parent=5 // pred_fallthru
        _
    $region6: #{_lambda_.3} parent=1 // loop_footer
      %s16 = sadd.s32 1, %s12
    $region7: #{_lambda_.3} parent=1 // loop_footer_branch
      %11 = sbr.rel target = $region3
    $region8: #{_lambda_.3} parent=1 // loop_exit
      _
    %1162 = vsyncpa [#allocation3], 1
    %s1163 = scalar_lea.sflag [#allocation3], 1
    %1164 = vsyncpa %s1163, 1

</llo_original>
